<compile_context>
chip_gen: v6e
topology: v6e:2x2x1
jax: 0.10.0
libtpu: 0.0.40
codegen_flags: <defaults>
</compile_context>

<pallas_src>
import jax
import jax.numpy as jnp
import numpy as np
from jax.experimental import pallas as pl
from jax.experimental.pallas import tpu as pltpu

EPS = 1e-5      # nn.InstanceNorm2d default eps
LANES = 128     # TPU lane width


def _round_up(n, m):
    return ((n + m - 1) // m) * m


# ----------------------------- Pallas kernel ------------------------------
def _resblocks_kernel(x_ref, w_ref, b_ref, a_ref, o_ref, p_ref):
    # x_ref : (1, H, KP)        one sample; rows = zero-halo-padded image rows
    # w_ref : (NC, 3, KP, KP)   banded 3x3 conv weights, NC = num_blocks * 2
    # b_ref : (NC, 1, KP)       bias rows (zeros in halo/padding columns)
    # a_ref : (KP, KP)          per-channel averaging matrix (for InstanceNorm)
    # o_ref : (1, H, KP)
    # p_ref : VMEM scratch (H+2, KP) holding vertically padded rows
    Hp2, KP = p_ref.shape
    H = Hp2 - 2
    num_convs = w_ref.shape[0]
    num_blocks = num_convs // 2

    # Zero the scratch once per sample. Only rows 1..H are rewritten per conv,
    # so rows 0 and H+1 remain the zero top/bottom conv halo for all convs.
    p_ref[...] = jnp.zeros((Hp2, KP), jnp.float32)

    A = a_ref[...]                        # (KP, KP)
    act = x_ref[0].astype(jnp.float32)    # (H, KP); halo columns are zero

    def conv3x3(a, ci):
        # 3 banded matmuls, one per kernel row dy. The banded (KP, KP) weight
        # already encodes the horizontal taps, channels and left/right halo,
        # and produces zero in the halo columns of the output.
        p_ref[pl.ds(1, H), :] = a
        y = jnp.dot(a, w_ref[ci, 1], preferred_element_type=jnp.float32)
        y = y + jnp.dot(p_ref[pl.ds(0, H), :], w_ref[ci, 0],
                        preferred_element_type=jnp.float32)
        y = y + jnp.dot(p_ref[pl.ds(2, H), :], w_ref[ci, 2],
                        preferred_element_type=jnp.float32)
        return y + b_ref[ci]              # (1, KP) bias row, broadcast over rows

    def instance_norm(y):
        # One pass over y: sum and sum-of-squares; the averaging matmul both
        # reduces over the channel's columns and broadcasts the result back to
        # every column of that channel (halo columns map to exactly 0).
        m1 = jnp.sum(jnp.dot(y, A, preferred_element_type=jnp.float32),
                     axis=0, keepdims=True)          # (1, KP) per-channel mean
        m2 = jnp.sum(jnp.dot(y * y, A, preferred_element_type=jnp.float32),
                     axis=0, keepdims=True)          # (1, KP) per-channel E[x^2]
        inv = jax.lax.rsqrt(m2 - m1 * m1 + EPS)      # biased variance + eps
        return (y - m1) * inv                        # halo columns stay exactly 0

    for blk in range(num_blocks):                    # small, static -> unrolled
        res = act
        y = jnp.maximum(instance_norm(conv3x3(act, 2 * blk)), 0.0)  # conv+IN+ReLU
        z = instance_norm(conv3x3(y, 2 * blk + 1))                  # conv+IN
        act = z + res                                               # residual
    o_ref[0] = act.astype(o_ref.dtype)


# --------------------------- host-side parameter prep ---------------------------
def _build_kernel_params(params, H, W, C, KP):
    """Banded weights (NC,3,KP,KP), bias rows (NC,1,KP), averaging matrix (KP,KP)."""
    WC = W * C
    wbs, brs = [], []
    for (w1, b1, w2, b2) in params:
        for w, b in ((w1, b1), (w2, b2)):
            w = np.asarray(w, np.float32)            # (3, 3, Cin, Cout) HWIO
            b = np.asarray(b, np.float32)            # (C,)
            wb = np.zeros((3, KP, KP), np.float32)
            for dy in range(3):
                for dx in range(3):
                    for x in range(W):
                        r = (x + dx) * C             # input column block (padded row)
                        c = (x + 1) * C              # output column block (padded row)
                        wb[dy, r:r + C, c:c + C] = w[dy, dx]
            br = np.zeros((1, KP), np.float32)
            br[0, C:C + WC] = np.tile(b, W)
            wbs.append(wb)
            brs.append(br)
    cols = np.arange(KP)
    real = (cols >= C) & (cols < C + WC)             # non-halo, non-lane-pad columns
    same_ch = (cols[:, None] % C) == (cols[None, :] % C)
    amat = np.where(same_ch & real[:, None] & real[None, :],
                    1.0 / (H * W), 0.0).astype(np.float32)
    return (jnp.asarray(np.stack(wbs)), jnp.asarray(np.stack(brs)),
            jnp.asarray(amat))


def res_blocks_pallas(x_nchw, params):
    """ResBlocks forward. x_nchw: (B, C, H, W); params: [(w1, b1, w2, b2)] HWIO."""
    B, C, H, W = x_nchw.shape
    KP = _round_up((W + 2) * C, LANES)               # lane-dense padded row width
    wband, brow, amat = _build_kernel_params(params, H, W, C, KP)
    NC = wband.shape[0]

    # NCHW -> NHWC -> (B, H, W*C) rows -> zero-pad to (B, H, KP): a C-wide left
    # halo plus right padding (C-wide right halo + lane padding), all zeros.
    x = jnp.transpose(x_nchw, (0, 2, 3, 1)).reshape(B, H, W * C)
    x = jnp.pad(x, ((0, 0), (0, 0), (C, KP - C - W * C)))

    out = pl.pallas_call(
        _resblocks_kernel,
        out_shape=jax.ShapeDtypeStruct((B, H, KP), x_nchw.dtype),
        grid=(B,),
        in_specs=[
            pl.BlockSpec((1, H, KP), lambda b: (b, 0, 0)),          # activation rows
            pl.BlockSpec((NC, 3, KP, KP), lambda b: (0, 0, 0, 0)),  # banded weights
            pl.BlockSpec((NC, 1, KP), lambda b: (0, 0, 0)),         # bias rows
            pl.BlockSpec((KP, KP), lambda b: (0, 0)),               # averaging matrix
        ],
        out_specs=pl.BlockSpec((1, H, KP), lambda b: (b, 0, 0)),
        scratch_shapes=[pltpu.VMEM((H + 2, KP), jnp.float32)],
        compiler_params=pltpu.CompilerParams(
            dimension_semantics=("parallel",)),       # one sample per TC (megacore)
    )(x, wband, brow, amat)

    out = out[:, :, C:C + W * C].reshape(B, H, W, C)
    return jnp.transpose(out, (0, 3, 1, 2))           # back to NCHW


# ----------------------- pure-JAX reference (for checking) -----------------------
def _conv3x3_ref(x, w_hwio, b):
    y = jax.lax.conv_general_dilated(
        x, w_hwio, window_strides=(1, 1), padding=((1, 1), (1, 1)),
        dimension_numbers=('NHWC', 'HWIO', 'NHWC'))
    return y + b.reshape(1, 1, 1, -1)


def _instance_norm_ref(x):
    mean = jnp.mean(x, axis=(1, 2), keepdims=True)
    var = jnp.mean((x - mean) ** 2, axis=(1, 2), keepdims=True)
    return (x - mean) * jax.lax.rsqrt(var + EPS)


def res_blocks_ref(x_nchw, params):
    x = jnp.transpose(x_nchw, (0, 2, 3, 1))
    for (w1, b1, w2, b2) in params:
        y = jnp.maximum(_instance_norm_ref(_conv3x3_ref(x, w1, b1)), 0.0)
        z = _instance_norm_ref(_conv3x3_ref(y, w2, b2))
        x = z + x
    return jnp.transpose(x, (0, 3, 1, 2))


if __name__ == "__main__":
    B, C, H, W = 2, 4, 16, 16     # ResBlocks(num_blocks=2, dim=4), NCHW input
    num_blocks = 2

    key = jax.random.PRNGKey(0)
    key, kx = jax.random.split(key)
    x = jax.random.normal(kx, (B, C, H, W), jnp.float32)

    # Deterministic synthetic parameters (two 3x3 convs per ResBlock, with bias).
    params = []
    for _ in range(num_blocks):
        key, k1, k2, k3, k4 = jax.random.split(key, 5)
        w1 = 0.1 * jax.random.normal(k1, (3, 3, C, C), jnp.float32)
        b1 = 0.1 * jax.random.normal(k2, (C,), jnp.float32)
        w2 = 0.1 * jax.random.normal(k3, (3, 3, C, C), jnp.float32)
        b2 = 0.1 * jax.random.normal(k4, (C,), jnp.float32)
        params.append((w1, b1, w2, b2))

    out = jax.block_until_ready(res_blocks_pallas(x, params))
    ref = jax.block_until_ready(res_blocks_ref(x, params))

    assert out.shape == (B, C, H, W)
    np.testing.assert_allclose(np.asarray(out), np.asarray(ref),
                               rtol=2e-4, atol=2e-4)
    print("KERNEL_OK")
</pallas_src>

<mosaic_0001>
module attributes {stable_mosaic.version = 11 : i64} {
  func.func @_resblocks_kernel(%arg0: i32, %arg1: memref<1x16x128xf32, #tpu.memory_space<vmem>>, %arg2: memref<4x3x128x128xf32, #tpu.memory_space<vmem>>, %arg3: memref<4x1x128xf32, #tpu.memory_space<vmem>>, %arg4: memref<128x128xf32, #tpu.memory_space<vmem>>, %arg5: memref<1x16x128xf32, #tpu.memory_space<vmem>>, %arg6: memref<18x128xf32, #tpu.memory_space<vmem>>) attributes {dimension_semantics = [#tpu.dimension_semantics<parallel>], iteration_bounds = array<i64: 2>, scalar_prefetch = 0 : i64, scratch_operands = 1 : i64, tpu.core_type = #tpu.core_type<tc>, window_params = [{transform_indices = @transform_0, window_bounds = array<i64: 1, 16, 128>}, {pipeline_mode = #tpu.pipeline_mode<synchronous>, transform_indices = @transform_1, window_bounds = array<i64: 4, 3, 128, 128>}, {pipeline_mode = #tpu.pipeline_mode<synchronous>, transform_indices = @transform_2, window_bounds = array<i64: 4, 1, 128>}, {pipeline_mode = #tpu.pipeline_mode<synchronous>, transform_indices = @transform_3, window_bounds = array<i64: 128, 128>}, {transform_indices = @transform_4, window_bounds = array<i64: 1, 16, 128>}]} {
    %cst = arith.constant 0.000000e+00 : f32
    %0 = vector.broadcast %cst : f32 to vector<18x128xf32>
    %c0 = arith.constant 0 : index
    %c0_0 = arith.constant 0 : index
    %1 = vector.load %arg6[%c0, %c0_0] : memref<18x128xf32, #tpu.memory_space<vmem>>, vector<18x128xf32>
    tpu.vector_store %arg6[%c0, %c0_0], %0 {strides = array<i32>} : memref<18x128xf32, #tpu.memory_space<vmem>>, vector<18x128xf32>,
    %c0_1 = arith.constant 0 : index
    %c0_2 = arith.constant 0 : index
    %2 = vector.load %arg4[%c0_1, %c0_2] : memref<128x128xf32, #tpu.memory_space<vmem>>, vector<128x128xf32>
    %c0_3 = arith.constant 0 : index
    %c0_4 = arith.constant 0 : index
    %c0_5 = arith.constant 0 : index
    %3 = vector.load %arg1[%c0_3, %c0_4, %c0_5] : memref<1x16x128xf32, #tpu.memory_space<vmem>>, vector<1x16x128xf32>
    %4 = vector.shape_cast %3 : vector<1x16x128xf32> to vector<16x128xf32>
    %c1 = arith.constant 1 : index
    %c0_6 = arith.constant 0 : index
    %5 = vector.load %arg6[%c1, %c0_6] : memref<18x128xf32, #tpu.memory_space<vmem>>, vector<16x128xf32>
    tpu.vector_store %arg6[%c1, %c0_6], %4 {strides = array<i32>} : memref<18x128xf32, #tpu.memory_space<vmem>>, vector<16x128xf32>,
    %c0_7 = arith.constant 0 : index
    %c1_8 = arith.constant 1 : index
    %c0_9 = arith.constant 0 : index
    %c0_10 = arith.constant 0 : index
    %6 = vector.load %arg2[%c0_7, %c1_8, %c0_9, %c0_10] : memref<4x3x128x128xf32, #tpu.memory_space<vmem>>, vector<1x1x128x128xf32>
    %7 = vector.shape_cast %6 : vector<1x1x128x128xf32> to vector<128x128xf32>
    %cst_11 = arith.constant dense<0.000000e+00> : vector<16x128xf32>
    %8 = tpu.matmul %4, %7, %cst_11 {dimension_numbers = #tpu.dot_dimension_numbers<[1], [0], [0], [1], [0, 0, 1, 1], [], []>} : vector<16x128xf32>, vector<128x128xf32>, vector<16x128xf32> -> vector<16x128xf32>
    %c0_12 = arith.constant 0 : index
    %c0_13 = arith.constant 0 : index
    %9 = vector.load %arg6[%c0_12, %c0_13] : memref<18x128xf32, #tpu.memory_space<vmem>>, vector<16x128xf32>
    %c0_14 = arith.constant 0 : index
    %c0_15 = arith.constant 0 : index
    %c0_16 = arith.constant 0 : index
    %c0_17 = arith.constant 0 : index
    %10 = vector.load %arg2[%c0_14, %c0_15, %c0_16, %c0_17] : memref<4x3x128x128xf32, #tpu.memory_space<vmem>>, vector<1x1x128x128xf32>
    %11 = vector.shape_cast %10 : vector<1x1x128x128xf32> to vector<128x128xf32>
    %cst_18 = arith.constant dense<0.000000e+00> : vector<16x128xf32>
    %12 = tpu.matmul %9, %11, %cst_18 {dimension_numbers = #tpu.dot_dimension_numbers<[1], [0], [0], [1], [0, 0, 1, 1], [], []>} : vector<16x128xf32>, vector<128x128xf32>, vector<16x128xf32> -> vector<16x128xf32>
    %13 = arith.addf %8, %12 : vector<16x128xf32>
    %c2 = arith.constant 2 : index
    %c0_19 = arith.constant 0 : index
    %14 = vector.load %arg6[%c2, %c0_19] : memref<18x128xf32, #tpu.memory_space<vmem>>, vector<16x128xf32>
    %c0_20 = arith.constant 0 : index
    %c2_21 = arith.constant 2 : index
    %c0_22 = arith.constant 0 : index
    %c0_23 = arith.constant 0 : index
    %15 = vector.load %arg2[%c0_20, %c2_21, %c0_22, %c0_23] : memref<4x3x128x128xf32, #tpu.memory_space<vmem>>, vector<1x1x128x128xf32>
    %16 = vector.shape_cast %15 : vector<1x1x128x128xf32> to vector<128x128xf32>
    %cst_24 = arith.constant dense<0.000000e+00> : vector<16x128xf32>
    %17 = tpu.matmul %14, %16, %cst_24 {dimension_numbers = #tpu.dot_dimension_numbers<[1], [0], [0], [1], [0, 0, 1, 1], [], []>} : vector<16x128xf32>, vector<128x128xf32>, vector<16x128xf32> -> vector<16x128xf32>
    %18 = arith.addf %13, %17 : vector<16x128xf32>
    %c0_25 = arith.constant 0 : index
    %c0_26 = arith.constant 0 : index
    %c0_27 = arith.constant 0 : index
    %19 = vector.load %arg3[%c0_25, %c0_26, %c0_27] : memref<4x1x128xf32, #tpu.memory_space<vmem>>, vector<1x1x128xf32>
    %20 = vector.shape_cast %19 : vector<1x1x128xf32> to vector<1x128xf32>
    %21 = vector.broadcast %20 : vector<1x128xf32> to vector<16x128xf32>
    %22 = arith.addf %18, %21 : vector<16x128xf32>
    %cst_28 = arith.constant dense<0.000000e+00> : vector<16x128xf32>
    %23 = tpu.matmul %22, %2, %cst_28 {dimension_numbers = #tpu.dot_dimension_numbers<[1], [0], [0], [1], [0, 0, 1, 1], [], []>} : vector<16x128xf32>, vector<128x128xf32>, vector<16x128xf32> -> vector<16x128xf32>
    %cst_29 = arith.constant dense<0.000000e+00> : vector<128xf32>
    %24 = vector.multi_reduction <add>, %23, %cst_29 [0] : vector<16x128xf32> to vector<128xf32>
    %25 = vector.shape_cast %24 : vector<128xf32> to vector<1x128xf32>
    %26 = arith.mulf %22, %22 : vector<16x128xf32>
    %cst_30 = arith.constant dense<0.000000e+00> : vector<16x128xf32>
    %27 = tpu.matmul %26, %2, %cst_30 {dimension_numbers = #tpu.dot_dimension_numbers<[1], [0], [0], [1], [0, 0, 1, 1], [], []>} : vector<16x128xf32>, vector<128x128xf32>, vector<16x128xf32> -> vector<16x128xf32>
    %cst_31 = arith.constant dense<0.000000e+00> : vector<128xf32>
    %28 = vector.multi_reduction <add>, %27, %cst_31 [0] : vector<16x128xf32> to vector<128xf32>
    %29 = vector.shape_cast %28 : vector<128xf32> to vector<1x128xf32>
    %30 = arith.mulf %25, %25 : vector<1x128xf32>
    %31 = arith.subf %29, %30 : vector<1x128xf32>
    %cst_32 = arith.constant 9.99999974E-6 : f32
    %32 = vector.broadcast %cst_32 : f32 to vector<1x128xf32>
    %33 = arith.addf %31, %32 : vector<1x128xf32>
    %34 = math.rsqrt %33 : vector<1x128xf32>
    %35 = vector.broadcast %25 : vector<1x128xf32> to vector<16x128xf32>
    %36 = arith.subf %22, %35 : vector<16x128xf32>
    %37 = vector.broadcast %34 : vector<1x128xf32> to vector<16x128xf32>
    %38 = arith.mulf %36, %37 : vector<16x128xf32>
    %cst_33 = arith.constant 0.000000e+00 : f32
    %39 = vector.broadcast %cst_33 : f32 to vector<16x128xf32>
    %40 = arith.maximumf %38, %39 : vector<16x128xf32>
    %c1_34 = arith.constant 1 : index
    %c0_35 = arith.constant 0 : index
    %41 = vector.load %arg6[%c1_34, %c0_35] : memref<18x128xf32, #tpu.memory_space<vmem>>, vector<16x128xf32>
    tpu.vector_store %arg6[%c1_34, %c0_35], %40 {strides = array<i32>} : memref<18x128xf32, #tpu.memory_space<vmem>>, vector<16x128xf32>,
    %c1_36 = arith.constant 1 : index
    %c1_37 = arith.constant 1 : index
    %c0_38 = arith.constant 0 : index
    %c0_39 = arith.constant 0 : index
    %42 = vector.load %arg2[%c1_36, %c1_37, %c0_38, %c0_39] : memref<4x3x128x128xf32, #tpu.memory_space<vmem>>, vector<1x1x128x128xf32>
    %43 = vector.shape_cast %42 : vector<1x1x128x128xf32> to vector<128x128xf32>
    %cst_40 = arith.constant dense<0.000000e+00> : vector<16x128xf32>
    %44 = tpu.matmul %40, %43, %cst_40 {dimension_numbers = #tpu.dot_dimension_numbers<[1], [0], [0], [1], [0, 0, 1, 1], [], []>} : vector<16x128xf32>, vector<128x128xf32>, vector<16x128xf32> -> vector<16x128xf32>
    %c0_41 = arith.constant 0 : index
    %c0_42 = arith.constant 0 : index
    %45 = vector.load %arg6[%c0_41, %c0_42] : memref<18x128xf32, #tpu.memory_space<vmem>>, vector<16x128xf32>
    %c1_43 = arith.constant 1 : index
    %c0_44 = arith.constant 0 : index
    %c0_45 = arith.constant 0 : index
    %c0_46 = arith.constant 0 : index
    %46 = vector.load %arg2[%c1_43, %c0_44, %c0_45, %c0_46] : memref<4x3x128x128xf32, #tpu.memory_space<vmem>>, vector<1x1x128x128xf32>
    %47 = vector.shape_cast %46 : vector<1x1x128x128xf32> to vector<128x128xf32>
    %cst_47 = arith.constant dense<0.000000e+00> : vector<16x128xf32>
    %48 = tpu.matmul %45, %47, %cst_47 {dimension_numbers = #tpu.dot_dimension_numbers<[1], [0], [0], [1], [0, 0, 1, 1], [], []>} : vector<16x128xf32>, vector<128x128xf32>, vector<16x128xf32> -> vector<16x128xf32>
    %49 = arith.addf %44, %48 : vector<16x128xf32>
    %c2_48 = arith.constant 2 : index
    %c0_49 = arith.constant 0 : index
    %50 = vector.load %arg6[%c2_48, %c0_49] : memref<18x128xf32, #tpu.memory_space<vmem>>, vector<16x128xf32>
    %c1_50 = arith.constant 1 : index
    %c2_51 = arith.constant 2 : index
    %c0_52 = arith.constant 0 : index
    %c0_53 = arith.constant 0 : index
    %51 = vector.load %arg2[%c1_50, %c2_51, %c0_52, %c0_53] : memref<4x3x128x128xf32, #tpu.memory_space<vmem>>, vector<1x1x128x128xf32>
    %52 = vector.shape_cast %51 : vector<1x1x128x128xf32> to vector<128x128xf32>
    %cst_54 = arith.constant dense<0.000000e+00> : vector<16x128xf32>
    %53 = tpu.matmul %50, %52, %cst_54 {dimension_numbers = #tpu.dot_dimension_numbers<[1], [0], [0], [1], [0, 0, 1, 1], [], []>} : vector<16x128xf32>, vector<128x128xf32>, vector<16x128xf32> -> vector<16x128xf32>
    %54 = arith.addf %49, %53 : vector<16x128xf32>
    %c1_55 = arith.constant 1 : index
    %c0_56 = arith.constant 0 : index
    %c0_57 = arith.constant 0 : index
    %55 = vector.load %arg3[%c1_55, %c0_56, %c0_57] : memref<4x1x128xf32, #tpu.memory_space<vmem>>, vector<1x1x128xf32>
    %56 = vector.shape_cast %55 : vector<1x1x128xf32> to vector<1x128xf32>
    %57 = vector.broadcast %56 : vector<1x128xf32> to vector<16x128xf32>
    %58 = arith.addf %54, %57 : vector<16x128xf32>
    %cst_58 = arith.constant dense<0.000000e+00> : vector<16x128xf32>
    %59 = tpu.matmul %58, %2, %cst_58 {dimension_numbers = #tpu.dot_dimension_numbers<[1], [0], [0], [1], [0, 0, 1, 1], [], []>} : vector<16x128xf32>, vector<128x128xf32>, vector<16x128xf32> -> vector<16x128xf32>
    %cst_59 = arith.constant dense<0.000000e+00> : vector<128xf32>
    %60 = vector.multi_reduction <add>, %59, %cst_59 [0] : vector<16x128xf32> to vector<128xf32>
    %61 = vector.shape_cast %60 : vector<128xf32> to vector<1x128xf32>
    %62 = arith.mulf %58, %58 : vector<16x128xf32>
    %cst_60 = arith.constant dense<0.000000e+00> : vector<16x128xf32>
    %63 = tpu.matmul %62, %2, %cst_60 {dimension_numbers = #tpu.dot_dimension_numbers<[1], [0], [0], [1], [0, 0, 1, 1], [], []>} : vector<16x128xf32>, vector<128x128xf32>, vector<16x128xf32> -> vector<16x128xf32>
    %cst_61 = arith.constant dense<0.000000e+00> : vector<128xf32>
    %64 = vector.multi_reduction <add>, %63, %cst_61 [0] : vector<16x128xf32> to vector<128xf32>
    %65 = vector.shape_cast %64 : vector<128xf32> to vector<1x128xf32>
    %66 = arith.mulf %61, %61 : vector<1x128xf32>
    %67 = arith.subf %65, %66 : vector<1x128xf32>
    %cst_62 = arith.constant 9.99999974E-6 : f32
    %68 = vector.broadcast %cst_62 : f32 to vector<1x128xf32>
    %69 = arith.addf %67, %68 : vector<1x128xf32>
    %70 = math.rsqrt %69 : vector<1x128xf32>
    %71 = vector.broadcast %61 : vector<1x128xf32> to vector<16x128xf32>
    %72 = arith.subf %58, %71 : vector<16x128xf32>
    %73 = vector.broadcast %70 : vector<1x128xf32> to vector<16x128xf32>
    %74 = arith.mulf %72, %73 : vector<16x128xf32>
    %75 = arith.addf %74, %4 : vector<16x128xf32>
    %c1_63 = arith.constant 1 : index
    %c0_64 = arith.constant 0 : index
    %76 = vector.load %arg6[%c1_63, %c0_64] : memref<18x128xf32, #tpu.memory_space<vmem>>, vector<16x128xf32>
    tpu.vector_store %arg6[%c1_63, %c0_64], %75 {strides = array<i32>} : memref<18x128xf32, #tpu.memory_space<vmem>>, vector<16x128xf32>,
    %c2_65 = arith.constant 2 : index
    %c1_66 = arith.constant 1 : index
    %c0_67 = arith.constant 0 : index
    %c0_68 = arith.constant 0 : index
    %77 = vector.load %arg2[%c2_65, %c1_66, %c0_67, %c0_68] : memref<4x3x128x128xf32, #tpu.memory_space<vmem>>, vector<1x1x128x128xf32>
    %78 = vector.shape_cast %77 : vector<1x1x128x128xf32> to vector<128x128xf32>
    %cst_69 = arith.constant dense<0.000000e+00> : vector<16x128xf32>
    %79 = tpu.matmul %75, %78, %cst_69 {dimension_numbers = #tpu.dot_dimension_numbers<[1], [0], [0], [1], [0, 0, 1, 1], [], []>} : vector<16x128xf32>, vector<128x128xf32>, vector<16x128xf32> -> vector<16x128xf32>
    %c0_70 = arith.constant 0 : index
    %c0_71 = arith.constant 0 : index
    %80 = vector.load %arg6[%c0_70, %c0_71] : memref<18x128xf32, #tpu.memory_space<vmem>>, vector<16x128xf32>
    %c2_72 = arith.constant 2 : index
    %c0_73 = arith.constant 0 : index
    %c0_74 = arith.constant 0 : index
    %c0_75 = arith.constant 0 : index
    %81 = vector.load %arg2[%c2_72, %c0_73, %c0_74, %c0_75] : memref<4x3x128x128xf32, #tpu.memory_space<vmem>>, vector<1x1x128x128xf32>
    %82 = vector.shape_cast %81 : vector<1x1x128x128xf32> to vector<128x128xf32>
    %cst_76 = arith.constant dense<0.000000e+00> : vector<16x128xf32>
    %83 = tpu.matmul %80, %82, %cst_76 {dimension_numbers = #tpu.dot_dimension_numbers<[1], [0], [0], [1], [0, 0, 1, 1], [], []>} : vector<16x128xf32>, vector<128x128xf32>, vector<16x128xf32> -> vector<16x128xf32>
    %84 = arith.addf %79, %83 : vector<16x128xf32>
    %c2_77 = arith.constant 2 : index
    %c0_78 = arith.constant 0 : index
    %85 = vector.load %arg6[%c2_77, %c0_78] : memref<18x128xf32, #tpu.memory_space<vmem>>, vector<16x128xf32>
    %c2_79 = arith.constant 2 : index
    %c2_80 = arith.constant 2 : index
    %c0_81 = arith.constant 0 : index
    %c0_82 = arith.constant 0 : index
    %86 = vector.load %arg2[%c2_79, %c2_80, %c0_81, %c0_82] : memref<4x3x128x128xf32, #tpu.memory_space<vmem>>, vector<1x1x128x128xf32>
    %87 = vector.shape_cast %86 : vector<1x1x128x128xf32> to vector<128x128xf32>
    %cst_83 = arith.constant dense<0.000000e+00> : vector<16x128xf32>
    %88 = tpu.matmul %85, %87, %cst_83 {dimension_numbers = #tpu.dot_dimension_numbers<[1], [0], [0], [1], [0, 0, 1, 1], [], []>} : vector<16x128xf32>, vector<128x128xf32>, vector<16x128xf32> -> vector<16x128xf32>
    %89 = arith.addf %84, %88 : vector<16x128xf32>
    %c2_84 = arith.constant 2 : index
    %c0_85 = arith.constant 0 : index
    %c0_86 = arith.constant 0 : index
    %90 = vector.load %arg3[%c2_84, %c0_85, %c0_86] : memref<4x1x128xf32, #tpu.memory_space<vmem>>, vector<1x1x128xf32>
    %91 = vector.shape_cast %90 : vector<1x1x128xf32> to vector<1x128xf32>
    %92 = vector.broadcast %91 : vector<1x128xf32> to vector<16x128xf32>
    %93 = arith.addf %89, %92 : vector<16x128xf32>
    %cst_87 = arith.constant dense<0.000000e+00> : vector<16x128xf32>
    %94 = tpu.matmul %93, %2, %cst_87 {dimension_numbers = #tpu.dot_dimension_numbers<[1], [0], [0], [1], [0, 0, 1, 1], [], []>} : vector<16x128xf32>, vector<128x128xf32>, vector<16x128xf32> -> vector<16x128xf32>
    %cst_88 = arith.constant dense<0.000000e+00> : vector<128xf32>
    %95 = vector.multi_reduction <add>, %94, %cst_88 [0] : vector<16x128xf32> to vector<128xf32>
    %96 = vector.shape_cast %95 : vector<128xf32> to vector<1x128xf32>
    %97 = arith.mulf %93, %93 : vector<16x128xf32>
    %cst_89 = arith.constant dense<0.000000e+00> : vector<16x128xf32>
    %98 = tpu.matmul %97, %2, %cst_89 {dimension_numbers = #tpu.dot_dimension_numbers<[1], [0], [0], [1], [0, 0, 1, 1], [], []>} : vector<16x128xf32>, vector<128x128xf32>, vector<16x128xf32> -> vector<16x128xf32>
    %cst_90 = arith.constant dense<0.000000e+00> : vector<128xf32>
    %99 = vector.multi_reduction <add>, %98, %cst_90 [0] : vector<16x128xf32> to vector<128xf32>
    %100 = vector.shape_cast %99 : vector<128xf32> to vector<1x128xf32>
    %101 = arith.mulf %96, %96 : vector<1x128xf32>
    %102 = arith.subf %100, %101 : vector<1x128xf32>
    %cst_91 = arith.constant 9.99999974E-6 : f32
    %103 = vector.broadcast %cst_91 : f32 to vector<1x128xf32>
    %104 = arith.addf %102, %103 : vector<1x128xf32>
    %105 = math.rsqrt %104 : vector<1x128xf32>
    %106 = vector.broadcast %96 : vector<1x128xf32> to vector<16x128xf32>
    %107 = arith.subf %93, %106 : vector<16x128xf32>
    %108 = vector.broadcast %105 : vector<1x128xf32> to vector<16x128xf32>
    %109 = arith.mulf %107, %108 : vector<16x128xf32>
    %cst_92 = arith.constant 0.000000e+00 : f32
    %110 = vector.broadcast %cst_92 : f32 to vector<16x128xf32>
    %111 = arith.maximumf %109, %110 : vector<16x128xf32>
    %c1_93 = arith.constant 1 : index
    %c0_94 = arith.constant 0 : index
    %112 = vector.load %arg6[%c1_93, %c0_94] : memref<18x128xf32, #tpu.memory_space<vmem>>, vector<16x128xf32>
    tpu.vector_store %arg6[%c1_93, %c0_94], %111 {strides = array<i32>} : memref<18x128xf32, #tpu.memory_space<vmem>>, vector<16x128xf32>,
    %c3 = arith.constant 3 : index
    %c1_95 = arith.constant 1 : index
    %c0_96 = arith.constant 0 : index
    %c0_97 = arith.constant 0 : index
    %113 = vector.load %arg2[%c3, %c1_95, %c0_96, %c0_97] : memref<4x3x128x128xf32, #tpu.memory_space<vmem>>, vector<1x1x128x128xf32>
    %114 = vector.shape_cast %113 : vector<1x1x128x128xf32> to vector<128x128xf32>
    %cst_98 = arith.constant dense<0.000000e+00> : vector<16x128xf32>
    %115 = tpu.matmul %111, %114, %cst_98 {dimension_numbers = #tpu.dot_dimension_numbers<[1], [0], [0], [1], [0, 0, 1, 1], [], []>} : vector<16x128xf32>, vector<128x128xf32>, vector<16x128xf32> -> vector<16x128xf32>
    %c0_99 = arith.constant 0 : index
    %c0_100 = arith.constant 0 : index
    %116 = vector.load %arg6[%c0_99, %c0_100] : memref<18x128xf32, #tpu.memory_space<vmem>>, vector<16x128xf32>
    %c3_101 = arith.constant 3 : index
    %c0_102 = arith.constant 0 : index
    %c0_103 = arith.constant 0 : index
    %c0_104 = arith.constant 0 : index
    %117 = vector.load %arg2[%c3_101, %c0_102, %c0_103, %c0_104] : memref<4x3x128x128xf32, #tpu.memory_space<vmem>>, vector<1x1x128x128xf32>
    %118 = vector.shape_cast %117 : vector<1x1x128x128xf32> to vector<128x128xf32>
    %cst_105 = arith.constant dense<0.000000e+00> : vector<16x128xf32>
    %119 = tpu.matmul %116, %118, %cst_105 {dimension_numbers = #tpu.dot_dimension_numbers<[1], [0], [0], [1], [0, 0, 1, 1], [], []>} : vector<16x128xf32>, vector<128x128xf32>, vector<16x128xf32> -> vector<16x128xf32>
    %120 = arith.addf %115, %119 : vector<16x128xf32>
    %c2_106 = arith.constant 2 : index
    %c0_107 = arith.constant 0 : index
    %121 = vector.load %arg6[%c2_106, %c0_107] : memref<18x128xf32, #tpu.memory_space<vmem>>, vector<16x128xf32>
    %c3_108 = arith.constant 3 : index
    %c2_109 = arith.constant 2 : index
    %c0_110 = arith.constant 0 : index
    %c0_111 = arith.constant 0 : index
    %122 = vector.load %arg2[%c3_108, %c2_109, %c0_110, %c0_111] : memref<4x3x128x128xf32, #tpu.memory_space<vmem>>, vector<1x1x128x128xf32>
    %123 = vector.shape_cast %122 : vector<1x1x128x128xf32> to vector<128x128xf32>
    %cst_112 = arith.constant dense<0.000000e+00> : vector<16x128xf32>
    %124 = tpu.matmul %121, %123, %cst_112 {dimension_numbers = #tpu.dot_dimension_numbers<[1], [0], [0], [1], [0, 0, 1, 1], [], []>} : vector<16x128xf32>, vector<128x128xf32>, vector<16x128xf32> -> vector<16x128xf32>
    %125 = arith.addf %120, %124 : vector<16x128xf32>
    %c3_113 = arith.constant 3 : index
    %c0_114 = arith.constant 0 : index
    %c0_115 = arith.constant 0 : index
    %126 = vector.load %arg3[%c3_113, %c0_114, %c0_115] : memref<4x1x128xf32, #tpu.memory_space<vmem>>, vector<1x1x128xf32>
    %127 = vector.shape_cast %126 : vector<1x1x128xf32> to vector<1x128xf32>
    %128 = vector.broadcast %127 : vector<1x128xf32> to vector<16x128xf32>
    %129 = arith.addf %125, %128 : vector<16x128xf32>
    %cst_116 = arith.constant dense<0.000000e+00> : vector<16x128xf32>
    %130 = tpu.matmul %129, %2, %cst_116 {dimension_numbers = #tpu.dot_dimension_numbers<[1], [0], [0], [1], [0, 0, 1, 1], [], []>} : vector<16x128xf32>, vector<128x128xf32>, vector<16x128xf32> -> vector<16x128xf32>
    %cst_117 = arith.constant dense<0.000000e+00> : vector<128xf32>
    %131 = vector.multi_reduction <add>, %130, %cst_117 [0] : vector<16x128xf32> to vector<128xf32>
    %132 = vector.shape_cast %131 : vector<128xf32> to vector<1x128xf32>
    %133 = arith.mulf %129, %129 : vector<16x128xf32>
    %cst_118 = arith.constant dense<0.000000e+00> : vector<16x128xf32>
    %134 = tpu.matmul %133, %2, %cst_118 {dimension_numbers = #tpu.dot_dimension_numbers<[1], [0], [0], [1], [0, 0, 1, 1], [], []>} : vector<16x128xf32>, vector<128x128xf32>, vector<16x128xf32> -> vector<16x128xf32>
    %cst_119 = arith.constant dense<0.000000e+00> : vector<128xf32>
    %135 = vector.multi_reduction <add>, %134, %cst_119 [0] : vector<16x128xf32> to vector<128xf32>
    %136 = vector.shape_cast %135 : vector<128xf32> to vector<1x128xf32>
    %137 = arith.mulf %132, %132 : vector<1x128xf32>
    %138 = arith.subf %136, %137 : vector<1x128xf32>
    %cst_120 = arith.constant 9.99999974E-6 : f32
    %139 = vector.broadcast %cst_120 : f32 to vector<1x128xf32>
    %140 = arith.addf %138, %139 : vector<1x128xf32>
    %141 = math.rsqrt %140 : vector<1x128xf32>
    %142 = vector.broadcast %132 : vector<1x128xf32> to vector<16x128xf32>
    %143 = arith.subf %129, %142 : vector<16x128xf32>
    %144 = vector.broadcast %141 : vector<1x128xf32> to vector<16x128xf32>
    %145 = arith.mulf %143, %144 : vector<16x128xf32>
    %146 = arith.addf %145, %75 : vector<16x128xf32>
    %c0_121 = arith.constant 0 : index
    %c0_122 = arith.constant 0 : index
    %c0_123 = arith.constant 0 : index
    %147 = vector.load %arg5[%c0_121, %c0_122, %c0_123] : memref<1x16x128xf32, #tpu.memory_space<vmem>>, vector<1x16x128xf32>
    %148 = vector.shape_cast %147 : vector<1x16x128xf32> to vector<16x128xf32>
    %149 = vector.shape_cast %146 : vector<16x128xf32> to vector<1x16x128xf32>
    tpu.vector_store %arg5[%c0_121, %c0_122, %c0_123], %149 {strides = array<i32>} : memref<1x16x128xf32, #tpu.memory_space<vmem>>, vector<1x16x128xf32>,
    return
  }
  func.func @transform_0(%arg0: i32) -> (i32, i32, i32) {
    %c0_i32 = arith.constant 0 : i32
    %c0_i32_0 = arith.constant 0 : i32
    %c0_i32_1 = arith.constant 0 : i32
    return %arg0, %c0_i32, %c0_i32_0 : i32, i32, i32
  }
  func.func @transform_1(%arg0: i32) -> (i32, i32, i32, i32) {
    %c0_i32 = arith.constant 0 : i32
    %c0_i32_0 = arith.constant 0 : i32
    %c0_i32_1 = arith.constant 0 : i32
    %c0_i32_2 = arith.constant 0 : i32
    %c0_i32_3 = arith.constant 0 : i32
    return %c0_i32, %c0_i32_0, %c0_i32_1, %c0_i32_2 : i32, i32, i32, i32
  }
  func.func @transform_2(%arg0: i32) -> (i32, i32, i32) {
    %c0_i32 = arith.constant 0 : i32
    %c0_i32_0 = arith.constant 0 : i32
    %c0_i32_1 = arith.constant 0 : i32
    %c0_i32_2 = arith.constant 0 : i32
    return %c0_i32, %c0_i32_0, %c0_i32_1 : i32, i32, i32
  }
  func.func @transform_3(%arg0: i32) -> (i32, i32) {
    %c0_i32 = arith.constant 0 : i32
    %c0_i32_0 = arith.constant 0 : i32
    %c0_i32_1 = arith.constant 0 : i32
    return %c0_i32, %c0_i32_0 : i32, i32
  }
  func.func @transform_4(%arg0: i32) -> (i32, i32, i32) {
    %c0_i32 = arith.constant 0 : i32
    %c0_i32_0 = arith.constant 0 : i32
    %c0_i32_1 = arith.constant 0 : i32
    return %arg0, %c0_i32, %c0_i32_0 : i32, i32, i32
  }
}

</mosaic_0001>

<llo_original>
// kernel: tpu_custom_call.1
$region0: #{tpu_custom_call.1}
  #allocation0 [shape = 'u32[]', space=smem, size = 0x4, offset = 0x4, fixed_abs, tag = 'smem constant byte address 0x4 - core index']
  #allocation1 [shape = 'u32[144,128]{1,0:T(1,128)}', space=vmem, size = 0x12000, scoped, tag = 'internal scratch']
  #allocation2 [shape = 'f32[18,128]{1,0:T(8,128)}', space=vmem, size = 0x3000, scoped, tag = 'scratch operand']
  %s0 = inlined_call_operand.hbm [shape: f32[2,16,128], index: 0, kind: input, shape index: {}]
  %s1 = inlined_call_operand.hbm [shape: f32[4,3,128,128], index: 1, kind: input, shape index: {}]
  %s2 = inlined_call_operand.hbm [shape: f32[4,1,128], index: 2, kind: input, shape index: {}]
  %s3 = inlined_call_operand.hbm [shape: f32[128,128], index: 3, kind: input, shape index: {}]
  %s4 = inlined_call_operand.hbm [shape: f32[2,16,128], index: 4, kind: output, shape index: {}]
  %s5 = sld [smem:[#allocation0]]
  $region65: #{tpu_custom_call.1} parent=0
    _
  %s7 = ssub.s32 1, %s5
  %s8 = scalar_select 0, %s7, %s5
  $region1: #{tpu_custom_call.1} parent=0
    #allocation3 [shape = 'u8[16384]{0}', space=vmem, size = 0x4000, scoped, tag = 'input window, operand 0']
    #allocation4 [shape = 's32[2]{0}', space=sflag, size = 0x8, scoped, tag = 'scoped memory for tpu_custom_call.1']
    #allocation5 [shape = 's32[2]{0}', space=sflag, size = 0x8, scoped, tag = 'scoped memory for tpu_custom_call.1']
    #allocation6 [shape = 'u8[786432]{0}', space=vmem, size = 0xc0000, scoped, tag = 'input window, operand 1, single buffered']
    #allocation7 [shape = 's32[1]{0}', space=sflag, size = 0x4, scoped, tag = 'scoped memory for tpu_custom_call.1']
    #allocation8 [shape = 'u8[2048]{0}', space=vmem, size = 0x800, scoped, tag = 'input window, operand 2, single buffered']
    #allocation9 [shape = 'u8[65536]{0}', space=vmem, size = 0x10000, scoped, tag = 'input window, operand 3, single buffered']
    #allocation10 [shape = 's32[1]{0}', space=sflag, size = 0x4, scoped, tag = 'scoped memory for tpu_custom_call.1']
    #allocation11 [shape = 'u8[16384]{0}', space=vmem, size = 0x4000, scoped, tag = 'output window, operand 0']
    %9 = vsyncpa [#allocation4], 0
    %s10 = scalar_lea.sflag [#allocation4], 1
    %11 = vsyncpa %s10, 0
    %12 = vsyncpa [#allocation7], 0
    %13 = vsyncpa [#allocation10], 0
    %14 = vsyncpa [#allocation5], 0
    %s15 = scalar_lea.sflag [#allocation5], 1
    %16 = vsyncpa %s15, 0
    loop: start=0, step=1, limit=4
    $region2: #{tpu_custom_call.1} parent=1 // loop_pre_header
      _
    $region3: #{tpu_custom_call.1} parent=1 // loop_header
      %s18 = sphi 0, %s22
      %p19 = scmp.ge.s32.totalorder %s18, 4
      %s28 = sphi 0, %s30
      %s31 = sphi 0, %s28
      %s32 = sphi 0, %s31
      %s48 = sphi 0, %s32
      %s52 = sphi 0, %s52
      %s54 = sphi 0, %s52
      %s55 = sphi 0, %s54
      %s69 = sphi 0, %s55
      %s73 = sphi 0, %s73
      %s75 = sphi 0, %s73
      %s76 = sphi 0, %s75
      %s90 = sphi 0, %s76
      %s94 = sphi 0, %s94
      %s96 = sphi 0, %s94
      %s97 = sphi 0, %s96
      %s111 = sphi 0, %s97
      %s117 = sphi 0, %s119
      %s120 = sphi 0, %s117
      %s121 = sphi 0, %s120
      %s137 = sphi 0, %s121
    $region4: #{tpu_custom_call.1} parent=1 // loop_header_branch
      %21 = sbr.rel (%p19) target = $region8
    $region5: #{tpu_custom_call.1} parent=1 // loop_body
      %s23 = ssub.s32 %s18, 1
      %s24 = ssub.s32 %s18, 2
      %s25 = sadd.s32 %s18, 1
      %s26 = ssub.s32 %s18, %s25
      %p27 = scmp.eq.s32.totalorder %s26, 0
      %s29 = sadd.s32 %s28, 1
      %s30 = scalar_select %p27, %s28, %s29
      %p33 = pneg %p27
      %p34 = scmp.eq.s32.totalorder %s18, 1
      %p35 = por %p33, %p34
      %p36 = scmp.ne.s32.totalorder %s28, %s31
      %p37 = scmp.eq.s32.totalorder %s18, 0
      %p38 = por %p36, %p37
      %p39 = scmp.ne.s32.totalorder %s28, %s31
      %p40 = scmp.eq.s32.totalorder %s23, 1
      %p41 = por %p39, %p40
      %p42 = scmp.ne.s32.totalorder %s31, %s32
      %p43 = scmp.eq.s32.totalorder %s23, 0
      %p44 = por %p42, %p43
      %p45 = scmp.ne.s32.totalorder %s31, %s32
      %p46 = scmp.eq.s32.totalorder %s24, 1
      %p47 = por %p45, %p46
      %p49 = scmp.ne.s32.totalorder %s32, %s48
      %p50 = scmp.eq.s32.totalorder %s24, 0
      %p51 = por %p49, %p50
      %s53 = sadd.s32 %s52, 1
      %p56 = scmp.eq.s32.totalorder %s18, 1
      %p57 = scmp.ne.s32.totalorder %s52, %s54
      %p58 = scmp.eq.s32.totalorder %s18, 0
      %p59 = por %p57, %p58
      %p60 = scmp.ne.s32.totalorder %s52, %s54
      %p61 = scmp.eq.s32.totalorder %s23, 1
      %p62 = por %p60, %p61
      %p63 = scmp.ne.s32.totalorder %s54, %s55
      %p64 = scmp.eq.s32.totalorder %s23, 0
      %p65 = por %p63, %p64
      %p66 = scmp.ne.s32.totalorder %s54, %s55
      %p67 = scmp.eq.s32.totalorder %s24, 1
      %p68 = por %p66, %p67
      %p70 = scmp.ne.s32.totalorder %s55, %s69
      %p71 = scmp.eq.s32.totalorder %s24, 0
      %p72 = por %p70, %p71
      %s74 = sadd.s32 %s73, 1
      %p77 = scmp.eq.s32.totalorder %s18, 1
      %p78 = scmp.ne.s32.totalorder %s73, %s75
      %p79 = scmp.eq.s32.totalorder %s18, 0
      %p80 = por %p78, %p79
      %p81 = scmp.ne.s32.totalorder %s73, %s75
      %p82 = scmp.eq.s32.totalorder %s23, 1
      %p83 = por %p81, %p82
      %p84 = scmp.ne.s32.totalorder %s75, %s76
      %p85 = scmp.eq.s32.totalorder %s23, 0
      %p86 = por %p84, %p85
      %p87 = scmp.ne.s32.totalorder %s75, %s76
      %p88 = scmp.eq.s32.totalorder %s24, 1
      %p89 = por %p87, %p88
      %p91 = scmp.ne.s32.totalorder %s76, %s90
      %p92 = scmp.eq.s32.totalorder %s24, 0
      %p93 = por %p91, %p92
      %s95 = sadd.s32 %s94, 1
      %p98 = scmp.eq.s32.totalorder %s18, 1
      %p99 = scmp.ne.s32.totalorder %s94, %s96
      %p100 = scmp.eq.s32.totalorder %s18, 0
      %p101 = por %p99, %p100
      %p102 = scmp.ne.s32.totalorder %s94, %s96
      %p103 = scmp.eq.s32.totalorder %s23, 1
      %p104 = por %p102, %p103
      %p105 = scmp.ne.s32.totalorder %s96, %s97
      %p106 = scmp.eq.s32.totalorder %s23, 0
      %p107 = por %p105, %p106
      %p108 = scmp.ne.s32.totalorder %s96, %s97
      %p109 = scmp.eq.s32.totalorder %s24, 1
      %p110 = por %p108, %p109
      %p112 = scmp.ne.s32.totalorder %s97, %s111
      %p113 = scmp.eq.s32.totalorder %s24, 0
      %p114 = por %p112, %p113
      %s115 = ssub.s32 %s18, %s25
      %p116 = scmp.eq.s32.totalorder %s115, 0
      %s118 = sadd.s32 %s117, 1
      %s119 = scalar_select %p116, %s117, %s118
      %p122 = pneg %p116
      %p123 = scmp.eq.s32.totalorder %s18, 1
      %p124 = por %p122, %p123
      %p125 = scmp.ne.s32.totalorder %s117, %s120
      %p126 = scmp.eq.s32.totalorder %s18, 0
      %p127 = por %p125, %p126
      %p128 = scmp.ne.s32.totalorder %s117, %s120
      %p129 = scmp.eq.s32.totalorder %s23, 1
      %p130 = por %p128, %p129
      %p131 = scmp.ne.s32.totalorder %s120, %s121
      %p132 = scmp.eq.s32.totalorder %s23, 0
      %p133 = por %p131, %p132
      %p134 = scmp.ne.s32.totalorder %s120, %s121
      %p135 = scmp.eq.s32.totalorder %s24, 1
      %p136 = por %p134, %p135
      %p138 = scmp.ne.s32.totalorder %s121, %s137
      %p139 = scmp.eq.s32.totalorder %s24, 0
      %p140 = por %p138, %p139
      %p141 = scmp.le.s32.totalorder 1, %s18
      %p142 = scmp.lt.s32.totalorder %s18, 3
      %p143 = pnand %p141, %p142
      %p144 = pneg %p143
      // Predicated region
      $region9: #{tpu_custom_call.1} parent=5 // pred_check
        _
      $region10: #{tpu_custom_call.1} parent=5 // pred_check_branch
        %146 = sbr.rel (%p143) target = $region12
      $region11: #{tpu_custom_call.1} parent=5 // pred_region
        %s147 = ssub.s32 %s18, 1
        // Predicated region
        $region13: #{tpu_custom_call.1} parent=11 // pred_check
          %p148 = pneg %p65
        $region14: #{tpu_custom_call.1} parent=11 // pred_check_branch
          %150 = sbr.rel (%p148) target = $region16
        $region15: #{tpu_custom_call.1} parent=11 // pred_region
          %s152 = ssub.s32 24576, 24576
          %153 = vsyncadd [#allocation7], %s152
          %s154 = sshll.u32 [#allocation6], 4
          %s155 = int_to_ptr.vmem [resolvable:$true] %s154
          %160 = dma.hbm_to_vmem [thread:$0]  %s1, 24576, %s155, [#allocation7], 128, 128, 8
        $region16: #{tpu_custom_call.1} parent=11 // pred_fallthru
          _
        // Predicated region
        $region17: #{tpu_custom_call.1} parent=11 // pred_check
          %p161 = pneg %p86
        $region18: #{tpu_custom_call.1} parent=11 // pred_check_branch
          %163 = sbr.rel (%p161) target = $region20
        $region19: #{tpu_custom_call.1} parent=11 // pred_region
          %s165 = ssub.s32 64, 64
          %166 = vsyncadd [#allocation7], %s165
          %s167 = sshll.u32 [#allocation8], 4
          %s168 = int_to_ptr.vmem [resolvable:$true] %s167
          %173 = dma.hbm_to_vmem [thread:$0]  %s2, 64, %s168, [#allocation7], 16, 16, 1
        $region20: #{tpu_custom_call.1} parent=11 // pred_fallthru
          _
        // Predicated region
        $region21: #{tpu_custom_call.1} parent=11 // pred_check
          %p174 = pneg %p107
        $region22: #{tpu_custom_call.1} parent=11 // pred_check_branch
          %176 = sbr.rel (%p174) target = $region24
        $region23: #{tpu_custom_call.1} parent=11 // pred_region
          %s178 = ssub.s32 2048, 2048
          %179 = vsyncadd [#allocation10], %s178
          %s180 = sshll.u32 [#allocation9], 4
          %s181 = int_to_ptr.vmem [resolvable:$true] %s180
          %186 = dma.hbm_to_vmem [thread:$0]  %s3, 2048, %s181, [#allocation10], 128, 128, 8
        $region24: #{tpu_custom_call.1} parent=11 // pred_fallthru
          _
      $region12: #{tpu_custom_call.1} parent=5 // pred_fallthru
        _
      %p187 = scmp.lt.s32.totalorder %s18, 2
      // Predicated region
      $region25: #{tpu_custom_call.1} parent=5 // pred_check
        %p188 = pneg %p187
      $region26: #{tpu_custom_call.1} parent=5 // pred_check_branch
        %190 = sbr.rel (%p188) target = $region28
      $region27: #{tpu_custom_call.1} parent=5 // pred_region
        // Predicated region
        $region29: #{tpu_custom_call.1} parent=27 // pred_check
          %p191 = pneg %p38
        $region30: #{tpu_custom_call.1} parent=27 // pred_check_branch
          %193 = sbr.rel (%p191) target = $region32
        $region31: #{tpu_custom_call.1} parent=27 // pred_region
          %s194 = sand.u32 %s28, 1
          %s195 = scalar_lea.sflag [#allocation4], %s194
          %s196 = sand.u32 %s28, 1
          %s197 = smul.addr %s196, 16
          %s198 = scalar_lea.vmem [#allocation3], %s197
          %s200 = ssub.s32 256, 256
          %201 = vsyncadd %s195, %s200
          %s202 = smul.addr %s18, 2
          %s203 = smul.addr %s202, 128
          %s204 = scalar_lea.hbm %s0, %s203
          %s205 = sshll.u32 %s198, 4
          %s206 = int_to_ptr.vmem [resolvable:$true] %s205
          %211 = dma.hbm_to_vmem [thread:$0]  %s204, 256, %s206, %s195, 128, 128, 8
        $region32: #{tpu_custom_call.1} parent=27 // pred_fallthru
          _
      $region28: #{tpu_custom_call.1} parent=5 // pred_fallthru
        _
      %p212 = scmp.le.s32.totalorder 1, %s18
      %p213 = scmp.lt.s32.totalorder %s18, 3
      %p214 = pnand %p212, %p213
      %p215 = pneg %p214
      // Predicated region
      $region33: #{tpu_custom_call.1} parent=5 // pred_check
        _
      $region34: #{tpu_custom_call.1} parent=5 // pred_check_branch
        %217 = sbr.rel (%p214) target = $region36
      $region35: #{tpu_custom_call.1} parent=5 // pred_region
        %s218 = ssub.s32 %s18, 1
        %s219 = sand.u32 %s31, 1
        %s220 = scalar_lea.sflag [#allocation4], %s219
        %s221 = sand.u32 %s31, 1
        %s222 = smul.addr %s221, 16
        %s223 = scalar_lea.vmem [#allocation3], %s222
        // Predicated region
        $region37: #{tpu_custom_call.1} parent=35 // pred_check
          %p224 = pneg %p44
        $region38: #{tpu_custom_call.1} parent=35 // pred_check_branch
          %226 = sbr.rel (%p224) target = $region40
        $region39: #{tpu_custom_call.1} parent=35 // pred_region
          %227 = dma.done %s220, 256
        $region40: #{tpu_custom_call.1} parent=35 // pred_fallthru
          _
        // Predicated region
        $region41: #{tpu_custom_call.1} parent=35 // pred_check
          %p228 = pneg %p65
        $region42: #{tpu_custom_call.1} parent=35 // pred_check_branch
          %230 = sbr.rel (%p228) target = $region44
        $region43: #{tpu_custom_call.1} parent=35 // pred_region
          %231 = dma.done [#allocation7], 24576
        $region44: #{tpu_custom_call.1} parent=35 // pred_fallthru
          _
        // Predicated region
        $region45: #{tpu_custom_call.1} parent=35 // pred_check
          %p232 = pneg %p86
        $region46: #{tpu_custom_call.1} parent=35 // pred_check_branch
          %234 = sbr.rel (%p232) target = $region48
        $region47: #{tpu_custom_call.1} parent=35 // pred_region
          %235 = dma.done [#allocation7], 64
        $region48: #{tpu_custom_call.1} parent=35 // pred_fallthru
          _
        // Predicated region
        $region49: #{tpu_custom_call.1} parent=35 // pred_check
          %p236 = pneg %p107
        $region50: #{tpu_custom_call.1} parent=35 // pred_check_branch
          %238 = sbr.rel (%p236) target = $region52
        $region51: #{tpu_custom_call.1} parent=35 // pred_region
          %239 = dma.done [#allocation10], 2048
        $region52: #{tpu_custom_call.1} parent=35 // pred_fallthru
          _
        %s240 = sand.u32 %s31, 1
        %s241 = scalar_lea.sflag [#allocation4], %s240
        %s242 = sand.u32 %s31, 1
        %s243 = smul.addr %s242, 16
        %s244 = scalar_lea.vmem [#allocation3], %s243
        %p245 = pneg %p44
        %p246 = pneg %p41
        %p247 = pneg %p65
        %p248 = pneg %p62
        %p249 = pneg %p86
        %p250 = pneg %p83
        %p251 = pneg %p107
        %p252 = pneg %p104
        %p253 = pneg %p133
        %p254 = pneg %p130
        %s255 = sand.u32 %s120, 1
        %s256 = scalar_lea.sflag [#allocation5], %s255
        %s257 = sand.u32 %s120, 1
        %s258 = smul.addr %s257, 16
        %s259 = scalar_lea.vmem [#allocation11], %s258
        %260 = vst [vmem:[#allocation2] sm:$0xff] 0.0
        %261 = vst [vmem:[#allocation2 + $0x8] sm:$0xff] 0.0
        %262 = vst [vmem:[#allocation2 + $0x10] sm:$0x3] 0.0
        %v263 = vld [vmem:[#allocation9] sm:$0xff]
        %v264 = vld [vmem:[#allocation9 + $0x8] sm:$0xff]
        %v265 = vld [vmem:[#allocation9 + $0x10] sm:$0xff]
        %v266 = vld [vmem:[#allocation9 + $0x18] sm:$0xff]
        %v267 = vld [vmem:[#allocation9 + $0x20] sm:$0xff]
        %v268 = vld [vmem:[#allocation9 + $0x28] sm:$0xff]
        %v269 = vld [vmem:[#allocation9 + $0x30] sm:$0xff]
        %v270 = vld [vmem:[#allocation9 + $0x38] sm:$0xff]
        %v271 = vld [vmem:[#allocation9 + $0x40] sm:$0xff]
        %v272 = vld [vmem:[#allocation9 + $0x48] sm:$0xff]
        %v273 = vld [vmem:[#allocation9 + $0x50] sm:$0xff]
        %v274 = vld [vmem:[#allocation9 + $0x58] sm:$0xff]
        %v275 = vld [vmem:[#allocation9 + $0x60] sm:$0xff]
        %v276 = vld [vmem:[#allocation9 + $0x68] sm:$0xff]
        %v277 = vld [vmem:[#allocation9 + $0x70] sm:$0xff]
        %v278 = vld [vmem:[#allocation9 + $0x78] sm:$0xff]
        %v279 = vld [vmem:[%s223] sm:$0xff]
        %v280 = vld [vmem:[%s223 + $0x8] sm:$0xff]
        %281 = vst [vmem:[#allocation2 + $0x1] sm:$0xff] %v279
        %282 = vst [vmem:[#allocation2 + $0x9] sm:$0xff] %v280
        %s283 = scalar_lea.vmem [#allocation6], 128
        %v284 = vld [vmem:[%s283] sm:$0xff]
        %v285 = vld [vmem:[%s283 + $0x8] sm:$0xff]
        %v286 = vld [vmem:[%s283 + $0x10] sm:$0xff]
        %v287 = vld [vmem:[%s283 + $0x18] sm:$0xff]
        %v288 = vld [vmem:[%s283 + $0x20] sm:$0xff]
        %v289 = vld [vmem:[%s283 + $0x28] sm:$0xff]
        %v290 = vld [vmem:[%s283 + $0x30] sm:$0xff]
        %v291 = vld [vmem:[%s283 + $0x38] sm:$0xff]
        %v292 = vld [vmem:[%s283 + $0x40] sm:$0xff]
        %v293 = vld [vmem:[%s283 + $0x48] sm:$0xff]
        %v294 = vld [vmem:[%s283 + $0x50] sm:$0xff]
        %v295 = vld [vmem:[%s283 + $0x58] sm:$0xff]
        %v296 = vld [vmem:[%s283 + $0x60] sm:$0xff]
        %v297 = vld [vmem:[%s283 + $0x68] sm:$0xff]
        %v298 = vld [vmem:[%s283 + $0x70] sm:$0xff]
        %v299 = vld [vmem:[%s283 + $0x78] sm:$0xff]
        %v300 = vld [vmem:[#allocation2] sm:$0xff]
        %v301 = vld [vmem:[#allocation2 + $0x8] sm:$0xff]
        %v302 = vld [vmem:[#allocation6] sm:$0xff]
        %v303 = vld [vmem:[#allocation6 + $0x8] sm:$0xff]
        %v304 = vld [vmem:[#allocation6 + $0x10] sm:$0xff]
        %v305 = vld [vmem:[#allocation6 + $0x18] sm:$0xff]
        %v306 = vld [vmem:[#allocation6 + $0x20] sm:$0xff]
        %v307 = vld [vmem:[#allocation6 + $0x28] sm:$0xff]
        %v308 = vld [vmem:[#allocation6 + $0x30] sm:$0xff]
        %v309 = vld [vmem:[#allocation6 + $0x38] sm:$0xff]
        %v310 = vld [vmem:[#allocation6 + $0x40] sm:$0xff]
        %v311 = vld [vmem:[#allocation6 + $0x48] sm:$0xff]
        %v312 = vld [vmem:[#allocation6 + $0x50] sm:$0xff]
        %v313 = vld [vmem:[#allocation6 + $0x58] sm:$0xff]
        %v314 = vld [vmem:[#allocation6 + $0x60] sm:$0xff]
        %v315 = vld [vmem:[#allocation6 + $0x68] sm:$0xff]
        %v316 = vld [vmem:[#allocation6 + $0x70] sm:$0xff]
        %v317 = vld [vmem:[#allocation6 + $0x78] sm:$0xff]
        %318 = vmatprep.subr.mxu0 0.0
        %319 = vmatpush1.msra.mxu0 %v317
        %320 = vmatprep.subr.mxu0 0.0
        %321 = vmatpush1.msra.mxu0 %v316
        %322 = vmatprep.subr.mxu0 0.0
        %323 = vmatpush1.msra.mxu0 %v315
        %324 = vmatprep.subr.mxu0 0.0
        %325 = vmatpush1.msra.mxu0 %v314
        %326 = vmatprep.subr.mxu0 0.0
        %327 = vmatpush1.msra.mxu0 %v313
        %328 = vmatprep.subr.mxu0 0.0
        %329 = vmatpush1.msra.mxu0 %v312
        %330 = vmatprep.subr.mxu0 0.0
        %331 = vmatpush1.msra.mxu0 %v311
        %332 = vmatprep.subr.mxu0 0.0
        %333 = vmatpush1.msra.mxu0 %v310
        %334 = vmatprep.subr.mxu0 0.0
        %335 = vmatpush1.msra.mxu0 %v309
        %336 = vmatprep.subr.mxu0 0.0
        %337 = vmatpush1.msra.mxu0 %v308
        %338 = vmatprep.subr.mxu0 0.0
        %339 = vmatpush1.msra.mxu0 %v307
        %340 = vmatprep.subr.mxu0 0.0
        %341 = vmatpush1.msra.mxu0 %v306
        %342 = vmatprep.subr.mxu0 0.0
        %343 = vmatpush1.msra.mxu0 %v305
        %344 = vmatprep.subr.mxu0 0.0
        %345 = vmatpush1.msra.mxu0 %v304
        %346 = vmatprep.subr.mxu0 0.0
        %347 = vmatpush1.msra.mxu0 %v303
        %348 = vmatprep.subr.mxu0 0.0
        %349 = vmatpush1.msra.mxu0 %v302
        %350 = vmatprep.subr.mxu0 0.0
        %351 = vmatpush2.msra.mxu0 0.0
        %352 = vmatprep.subr.mxu0 0.0
        %353 = vmatpush2.msra.mxu0 0.0
        %354 = vmatprep.subr.mxu0 0.0
        %355 = vmatpush2.msra.mxu0 0.0
        %356 = vmatprep.subr.mxu0 0.0
        %357 = vmatpush2.msra.mxu0 0.0
        %358 = vmatprep.subr.mxu0 0.0
        %359 = vmatpush2.msra.mxu0 0.0
        %360 = vmatprep.subr.mxu0 0.0
        %361 = vmatpush2.msra.mxu0 0.0
        %362 = vmatprep.subr.mxu0 0.0
        %363 = vmatpush2.msra.mxu0 0.0
        %364 = vmatprep.subr.mxu0 0.0
        %365 = vmatpush2.msra.mxu0 0.0
        %366 = vmatprep.subr.mxu0 0.0
        %367 = vmatpush2.msra.mxu0 0.0
        %368 = vmatprep.subr.mxu0 0.0
        %369 = vmatpush2.msra.mxu0 0.0
        %370 = vmatprep.subr.mxu0 0.0
        %371 = vmatpush2.msra.mxu0 0.0
        %372 = vmatprep.subr.mxu0 0.0
        %373 = vmatpush2.msra.mxu0 0.0
        %374 = vmatprep.subr.mxu0 0.0
        %375 = vmatpush2.msra.mxu0 0.0
        %376 = vmatprep.subr.mxu0 0.0
        %377 = vmatpush2.msra.mxu0 0.0
        %378 = vmatprep.subr.mxu0 0.0
        %379 = vmatpush2.msra.mxu0 0.0
        %380 = vmatprep.subr.mxu0 0.0
        %381 = vmatpush2.msra.mxu0 0.0
        %382 = vmatprep.mubr.f32.mxu0 0.0
        %383 = vmatmul.mubr.f32.gmra.mxu0 %v300
        %v384 = vpop.f32.mrf.mxu0
        %v385 = vadd.f32 0.0, %v384
        %v386 = vpop.f32.mrf.mxu0
        %387 = vmatprep.mubr.f32.mxu0 0.0
        %388 = vmatmul.mubr.f32.gmra.mxu0 %v301
        %v389 = vpop.f32.mrf.mxu0
        %v390 = vadd.f32 0.0, %v389
        %v391 = vpop.f32.mrf.mxu0
        %392 = vdwg.mxu0
        %393 = vmatprep.subr.mxu0 0.0
        %394 = vmatpush1.msra.mxu0 %v299
        %395 = vmatprep.subr.mxu0 0.0
        %396 = vmatpush1.msra.mxu0 %v298
        %397 = vmatprep.subr.mxu0 0.0
        %398 = vmatpush1.msra.mxu0 %v297
        %399 = vmatprep.subr.mxu0 0.0
        %400 = vmatpush1.msra.mxu0 %v296
        %401 = vmatprep.subr.mxu0 0.0
        %402 = vmatpush1.msra.mxu0 %v295
        %403 = vmatprep.subr.mxu0 0.0
        %404 = vmatpush1.msra.mxu0 %v294
        %405 = vmatprep.subr.mxu0 0.0
        %406 = vmatpush1.msra.mxu0 %v293
        %407 = vmatprep.subr.mxu0 0.0
        %408 = vmatpush1.msra.mxu0 %v292
        %409 = vmatprep.subr.mxu0 0.0
        %410 = vmatpush1.msra.mxu0 %v291
        %411 = vmatprep.subr.mxu0 0.0
        %412 = vmatpush1.msra.mxu0 %v290
        %413 = vmatprep.subr.mxu0 0.0
        %414 = vmatpush1.msra.mxu0 %v289
        %415 = vmatprep.subr.mxu0 0.0
        %416 = vmatpush1.msra.mxu0 %v288
        %417 = vmatprep.subr.mxu0 0.0
        %418 = vmatpush1.msra.mxu0 %v287
        %419 = vmatprep.subr.mxu0 0.0
        %420 = vmatpush1.msra.mxu0 %v286
        %421 = vmatprep.subr.mxu0 0.0
        %422 = vmatpush1.msra.mxu0 %v285
        %423 = vmatprep.subr.mxu0 0.0
        %424 = vmatpush1.msra.mxu0 %v284
        %425 = vmatprep.subr.mxu0 0.0
        %426 = vmatpush2.msra.mxu0 0.0
        %427 = vmatprep.subr.mxu0 0.0
        %428 = vmatpush2.msra.mxu0 0.0
        %429 = vmatprep.subr.mxu0 0.0
        %430 = vmatpush2.msra.mxu0 0.0
        %431 = vmatprep.subr.mxu0 0.0
        %432 = vmatpush2.msra.mxu0 0.0
        %433 = vmatprep.subr.mxu0 0.0
        %434 = vmatpush2.msra.mxu0 0.0
        %435 = vmatprep.subr.mxu0 0.0
        %436 = vmatpush2.msra.mxu0 0.0
        %437 = vmatprep.subr.mxu0 0.0
        %438 = vmatpush2.msra.mxu0 0.0
        %439 = vmatprep.subr.mxu0 0.0
        %440 = vmatpush2.msra.mxu0 0.0
        %441 = vmatprep.subr.mxu0 0.0
        %442 = vmatpush2.msra.mxu0 0.0
        %443 = vmatprep.subr.mxu0 0.0
        %444 = vmatpush2.msra.mxu0 0.0
        %445 = vmatprep.subr.mxu0 0.0
        %446 = vmatpush2.msra.mxu0 0.0
        %447 = vmatprep.subr.mxu0 0.0
        %448 = vmatpush2.msra.mxu0 0.0
        %449 = vmatprep.subr.mxu0 0.0
        %450 = vmatpush2.msra.mxu0 0.0
        %451 = vmatprep.subr.mxu0 0.0
        %452 = vmatpush2.msra.mxu0 0.0
        %453 = vmatprep.subr.mxu0 0.0
        %454 = vmatpush2.msra.mxu0 0.0
        %455 = vmatprep.subr.mxu0 0.0
        %456 = vmatpush2.msra.mxu0 0.0
        %457 = vmatprep.mubr.f32.mxu0 0.0
        %458 = vmatmul.mubr.f32.gmra.mxu0 %v279
        %v459 = vpop.f32.mrf.mxu0
        %v460 = vadd.f32 %v385, %v459
        %v461 = vpop.f32.mrf.mxu0
        %462 = vmatprep.mubr.f32.mxu0 0.0
        %463 = vmatmul.mubr.f32.gmra.mxu0 %v280
        %v464 = vpop.f32.mrf.mxu0
        %v465 = vadd.f32 %v390, %v464
        %v466 = vpop.f32.mrf.mxu0
        %467 = vdwg.mxu0
        %v468 = vld [vmem:[#allocation2 + $0x2] sm:$0xff]
        %v469 = vld [vmem:[#allocation2 + $0xa] sm:$0xff]
        %s470 = scalar_lea.vmem [#allocation6], 256
        %v471 = vld [vmem:[%s470] sm:$0xff]
        %v472 = vld [vmem:[%s470 + $0x8] sm:$0xff]
        %v473 = vld [vmem:[%s470 + $0x10] sm:$0xff]
        %v474 = vld [vmem:[%s470 + $0x18] sm:$0xff]
        %v475 = vld [vmem:[%s470 + $0x20] sm:$0xff]
        %v476 = vld [vmem:[%s470 + $0x28] sm:$0xff]
        %v477 = vld [vmem:[%s470 + $0x30] sm:$0xff]
        %v478 = vld [vmem:[%s470 + $0x38] sm:$0xff]
        %v479 = vld [vmem:[%s470 + $0x40] sm:$0xff]
        %v480 = vld [vmem:[%s470 + $0x48] sm:$0xff]
        %v481 = vld [vmem:[%s470 + $0x50] sm:$0xff]
        %v482 = vld [vmem:[%s470 + $0x58] sm:$0xff]
        %v483 = vld [vmem:[%s470 + $0x60] sm:$0xff]
        %v484 = vld [vmem:[%s470 + $0x68] sm:$0xff]
        %v485 = vld [vmem:[%s470 + $0x70] sm:$0xff]
        %v486 = vld [vmem:[%s470 + $0x78] sm:$0xff]
        %487 = vmatprep.subr.mxu0 0.0
        %488 = vmatpush1.msra.mxu0 %v486
        %489 = vmatprep.subr.mxu0 0.0
        %490 = vmatpush1.msra.mxu0 %v485
        %491 = vmatprep.subr.mxu0 0.0
        %492 = vmatpush1.msra.mxu0 %v484
        %493 = vmatprep.subr.mxu0 0.0
        %494 = vmatpush1.msra.mxu0 %v483
        %495 = vmatprep.subr.mxu0 0.0
        %496 = vmatpush1.msra.mxu0 %v482
        %497 = vmatprep.subr.mxu0 0.0
        %498 = vmatpush1.msra.mxu0 %v481
        %499 = vmatprep.subr.mxu0 0.0
        %500 = vmatpush1.msra.mxu0 %v480
        %501 = vmatprep.subr.mxu0 0.0
        %502 = vmatpush1.msra.mxu0 %v479
        %503 = vmatprep.subr.mxu0 0.0
        %504 = vmatpush1.msra.mxu0 %v478
        %505 = vmatprep.subr.mxu0 0.0
        %506 = vmatpush1.msra.mxu0 %v477
        %507 = vmatprep.subr.mxu0 0.0
        %508 = vmatpush1.msra.mxu0 %v476
        %509 = vmatprep.subr.mxu0 0.0
        %510 = vmatpush1.msra.mxu0 %v475
        %511 = vmatprep.subr.mxu0 0.0
        %512 = vmatpush1.msra.mxu0 %v474
        %513 = vmatprep.subr.mxu0 0.0
        %514 = vmatpush1.msra.mxu0 %v473
        %515 = vmatprep.subr.mxu0 0.0
        %516 = vmatpush1.msra.mxu0 %v472
        %517 = vmatprep.subr.mxu0 0.0
        %518 = vmatpush1.msra.mxu0 %v471
        %519 = vmatprep.subr.mxu0 0.0
        %520 = vmatpush2.msra.mxu0 0.0
        %521 = vmatprep.subr.mxu0 0.0
        %522 = vmatpush2.msra.mxu0 0.0
        %523 = vmatprep.subr.mxu0 0.0
        %524 = vmatpush2.msra.mxu0 0.0
        %525 = vmatprep.subr.mxu0 0.0
        %526 = vmatpush2.msra.mxu0 0.0
        %527 = vmatprep.subr.mxu0 0.0
        %528 = vmatpush2.msra.mxu0 0.0
        %529 = vmatprep.subr.mxu0 0.0
        %530 = vmatpush2.msra.mxu0 0.0
        %531 = vmatprep.subr.mxu0 0.0
        %532 = vmatpush2.msra.mxu0 0.0
        %533 = vmatprep.subr.mxu0 0.0
        %534 = vmatpush2.msra.mxu0 0.0
        %535 = vmatprep.subr.mxu0 0.0
        %536 = vmatpush2.msra.mxu0 0.0
        %537 = vmatprep.subr.mxu0 0.0
        %538 = vmatpush2.msra.mxu0 0.0
        %539 = vmatprep.subr.mxu0 0.0
        %540 = vmatpush2.msra.mxu0 0.0
        %541 = vmatprep.subr.mxu0 0.0
        %542 = vmatpush2.msra.mxu0 0.0
        %543 = vmatprep.subr.mxu0 0.0
        %544 = vmatpush2.msra.mxu0 0.0
        %545 = vmatprep.subr.mxu0 0.0
        %546 = vmatpush2.msra.mxu0 0.0
        %547 = vmatprep.subr.mxu0 0.0
        %548 = vmatpush2.msra.mxu0 0.0
        %549 = vmatprep.subr.mxu0 0.0
        %550 = vmatpush2.msra.mxu0 0.0
        %551 = vmatprep.mubr.f32.mxu0 0.0
        %552 = vmatmul.mubr.f32.gmra.mxu0 %v468
        %v553 = vpop.f32.mrf.mxu0
        %v554 = vadd.f32 0.0, %v553
        %v555 = vpop.f32.mrf.mxu0
        %556 = vmatprep.mubr.f32.mxu0 0.0
        %557 = vmatmul.mubr.f32.gmra.mxu0 %v469
        %v558 = vpop.f32.mrf.mxu0
        %v559 = vadd.f32 0.0, %v558
        %v560 = vpop.f32.mrf.mxu0
        %561 = vdwg.mxu0
        %v562 = vadd.f32 %v460, %v554
        %v563 = vadd.f32 %v465, %v559
        %v564 = vld [vmem:[#allocation8] sm:$0x1]
        %v566 = vlaneseq
        %v567 = vshrl.u32 %v566, 7
        %v568 = vsub.s32 0, %v567
        %v569 = vrot.slane %v564, %v568
        %v571 = vadd.f32 %v562, %v569
        %v572 = vadd.f32 %v563, %v569
        %573 = vmatprep.subr.mxu0 0.0
        %574 = vmatpush1.msra.mxu0 %v278
        %575 = vmatprep.subr.mxu0 0.0
        %576 = vmatpush1.msra.mxu0 %v277
        %577 = vmatprep.subr.mxu0 0.0
        %578 = vmatpush1.msra.mxu0 %v276
        %579 = vmatprep.subr.mxu0 0.0
        %580 = vmatpush1.msra.mxu0 %v275
        %581 = vmatprep.subr.mxu0 0.0
        %582 = vmatpush1.msra.mxu0 %v274
        %583 = vmatprep.subr.mxu0 0.0
        %584 = vmatpush1.msra.mxu0 %v273
        %585 = vmatprep.subr.mxu0 0.0
        %586 = vmatpush1.msra.mxu0 %v272
        %587 = vmatprep.subr.mxu0 0.0
        %588 = vmatpush1.msra.mxu0 %v271
        %589 = vmatprep.subr.mxu0 0.0
        %590 = vmatpush1.msra.mxu0 %v270
        %591 = vmatprep.subr.mxu0 0.0
        %592 = vmatpush1.msra.mxu0 %v269
        %593 = vmatprep.subr.mxu0 0.0
        %594 = vmatpush1.msra.mxu0 %v268
        %595 = vmatprep.subr.mxu0 0.0
        %596 = vmatpush1.msra.mxu0 %v267
        %597 = vmatprep.subr.mxu0 0.0
        %598 = vmatpush1.msra.mxu0 %v266
        %599 = vmatprep.subr.mxu0 0.0
        %600 = vmatpush1.msra.mxu0 %v265
        %601 = vmatprep.subr.mxu0 0.0
        %602 = vmatpush1.msra.mxu0 %v264
        %603 = vmatprep.subr.mxu0 0.0
        %604 = vmatpush1.msra.mxu0 %v263
        %605 = vmatprep.subr.mxu0 0.0
        %606 = vmatpush2.msra.mxu0 0.0
        %607 = vmatprep.subr.mxu0 0.0
        %608 = vmatpush2.msra.mxu0 0.0
        %609 = vmatprep.subr.mxu0 0.0
        %610 = vmatpush2.msra.mxu0 0.0
        %611 = vmatprep.subr.mxu0 0.0
        %612 = vmatpush2.msra.mxu0 0.0
        %613 = vmatprep.subr.mxu0 0.0
        %614 = vmatpush2.msra.mxu0 0.0
        %615 = vmatprep.subr.mxu0 0.0
        %616 = vmatpush2.msra.mxu0 0.0
        %617 = vmatprep.subr.mxu0 0.0
        %618 = vmatpush2.msra.mxu0 0.0
        %619 = vmatprep.subr.mxu0 0.0
        %620 = vmatpush2.msra.mxu0 0.0
        %621 = vmatprep.subr.mxu0 0.0
        %622 = vmatpush2.msra.mxu0 0.0
        %623 = vmatprep.subr.mxu0 0.0
        %624 = vmatpush2.msra.mxu0 0.0
        %625 = vmatprep.subr.mxu0 0.0
        %626 = vmatpush2.msra.mxu0 0.0
        %627 = vmatprep.subr.mxu0 0.0
        %628 = vmatpush2.msra.mxu0 0.0
        %629 = vmatprep.subr.mxu0 0.0
        %630 = vmatpush2.msra.mxu0 0.0
        %631 = vmatprep.subr.mxu0 0.0
        %632 = vmatpush2.msra.mxu0 0.0
        %633 = vmatprep.subr.mxu0 0.0
        %634 = vmatpush2.msra.mxu0 0.0
        %635 = vmatprep.subr.mxu0 0.0
        %636 = vmatpush2.msra.mxu0 0.0
        %637 = vmatprep.mubr.f32.mxu0 0.0
        %638 = vmatmul.mubr.f32.gmra.mxu0 %v571
        %v639 = vpop.f32.mrf.mxu0
        %v640 = vadd.f32 0.0, %v639
        %v641 = vpop.f32.mrf.mxu0
        %642 = vmatprep.mubr.f32.mxu0 0.0
        %643 = vmatmul.mubr.f32.gmra.mxu0 %v572
        %v644 = vpop.f32.mrf.mxu0
        %v645 = vadd.f32 0.0, %v644
        %v646 = vpop.f32.mrf.mxu0
        %647 = vdwg.mxu0
        %v648 = vadd.f32 %v640, %v645
        %v649 = vrot.slane %v648, 4
        %v650 = vadd.f32 %v648, %v649
        %v651 = vrot.slane %v650, 2
        %v652 = vadd.f32 %v650, %v651
        %v653 = vrot.slane %v652, 1
        %v654 = vadd.f32 %v652, %v653
        %v655 = vmul.f32 %v571, %v571
        %v656 = vmul.f32 %v572, %v572
        %657 = vmatprep.subr.mxu0 0.0
        %658 = vmatpush1.msra.mxu0 %v278
        %659 = vmatprep.subr.mxu0 0.0
        %660 = vmatpush1.msra.mxu0 %v277
        %661 = vmatprep.subr.mxu0 0.0
        %662 = vmatpush1.msra.mxu0 %v276
        %663 = vmatprep.subr.mxu0 0.0
        %664 = vmatpush1.msra.mxu0 %v275
        %665 = vmatprep.subr.mxu0 0.0
        %666 = vmatpush1.msra.mxu0 %v274
        %667 = vmatprep.subr.mxu0 0.0
        %668 = vmatpush1.msra.mxu0 %v273
        %669 = vmatprep.subr.mxu0 0.0
        %670 = vmatpush1.msra.mxu0 %v272
        %671 = vmatprep.subr.mxu0 0.0
        %672 = vmatpush1.msra.mxu0 %v271
        %673 = vmatprep.subr.mxu0 0.0
        %674 = vmatpush1.msra.mxu0 %v270
        %675 = vmatprep.subr.mxu0 0.0
        %676 = vmatpush1.msra.mxu0 %v269
        %677 = vmatprep.subr.mxu0 0.0
        %678 = vmatpush1.msra.mxu0 %v268
        %679 = vmatprep.subr.mxu0 0.0
        %680 = vmatpush1.msra.mxu0 %v267
        %681 = vmatprep.subr.mxu0 0.0
        %682 = vmatpush1.msra.mxu0 %v266
        %683 = vmatprep.subr.mxu0 0.0
        %684 = vmatpush1.msra.mxu0 %v265
        %685 = vmatprep.subr.mxu0 0.0
        %686 = vmatpush1.msra.mxu0 %v264
        %687 = vmatprep.subr.mxu0 0.0
        %688 = vmatpush1.msra.mxu0 %v263
        %689 = vmatprep.subr.mxu0 0.0
        %690 = vmatpush2.msra.mxu0 0.0
        %691 = vmatprep.subr.mxu0 0.0
        %692 = vmatpush2.msra.mxu0 0.0
        %693 = vmatprep.subr.mxu0 0.0
        %694 = vmatpush2.msra.mxu0 0.0
        %695 = vmatprep.subr.mxu0 0.0
        %696 = vmatpush2.msra.mxu0 0.0
        %697 = vmatprep.subr.mxu0 0.0
        %698 = vmatpush2.msra.mxu0 0.0
        %699 = vmatprep.subr.mxu0 0.0
        %700 = vmatpush2.msra.mxu0 0.0
        %701 = vmatprep.subr.mxu0 0.0
        %702 = vmatpush2.msra.mxu0 0.0
        %703 = vmatprep.subr.mxu0 0.0
        %704 = vmatpush2.msra.mxu0 0.0
        %705 = vmatprep.subr.mxu0 0.0
        %706 = vmatpush2.msra.mxu0 0.0
        %707 = vmatprep.subr.mxu0 0.0
        %708 = vmatpush2.msra.mxu0 0.0
        %709 = vmatprep.subr.mxu0 0.0
        %710 = vmatpush2.msra.mxu0 0.0
        %711 = vmatprep.subr.mxu0 0.0
        %712 = vmatpush2.msra.mxu0 0.0
        %713 = vmatprep.subr.mxu0 0.0
        %714 = vmatpush2.msra.mxu0 0.0
        %715 = vmatprep.subr.mxu0 0.0
        %716 = vmatpush2.msra.mxu0 0.0
        %717 = vmatprep.subr.mxu0 0.0
        %718 = vmatpush2.msra.mxu0 0.0
        %719 = vmatprep.subr.mxu0 0.0
        %720 = vmatpush2.msra.mxu0 0.0
        %721 = vmatprep.mubr.f32.mxu0 0.0
        %722 = vmatmul.mubr.f32.gmra.mxu0 %v655
        %v723 = vpop.f32.mrf.mxu0
        %v724 = vadd.f32 0.0, %v723
        %v725 = vpop.f32.mrf.mxu0
        %726 = vmatprep.mubr.f32.mxu0 0.0
        %727 = vmatmul.mubr.f32.gmra.mxu0 %v656
        %v728 = vpop.f32.mrf.mxu0
        %v729 = vadd.f32 0.0, %v728
        %v730 = vpop.f32.mrf.mxu0
        %731 = vdwg.mxu0
        %v732 = vadd.f32 %v724, %v729
        %v733 = vrot.slane %v732, 4
        %v734 = vadd.f32 %v732, %v733
        %v735 = vrot.slane %v734, 2
        %v736 = vadd.f32 %v734, %v735
        %v737 = vrot.slane %v736, 1
        %v738 = vadd.f32 %v736, %v737
        %v739 = vmul.f32 %v654, %v654
        %v740 = vsub.f32 %v738, %v739
        %v741 = vadd.f32 %v740, 1e-05
        %v742 = vrsqrt.pop %v741
        %v743 = vsub.f32 %v571, %v654
        %v744 = vsub.f32 %v572, %v654
        %v745 = vmul.f32 %v743, %v742
        %v746 = vmul.f32 %v744, %v742
        %v747 = vmax.f32 %v745, 0.0
        %v748 = vmax.f32 %v746, 0.0
        %749 = vst [vmem:[#allocation2 + $0x1] sm:$0xff] %v747
        %750 = vst [vmem:[#allocation2 + $0x9] sm:$0xff] %v748
        %s751 = scalar_lea.vmem [#allocation6], 512
        %v752 = vld [vmem:[%s751] sm:$0xff]
        %v753 = vld [vmem:[%s751 + $0x8] sm:$0xff]
        %v754 = vld [vmem:[%s751 + $0x10] sm:$0xff]
        %v755 = vld [vmem:[%s751 + $0x18] sm:$0xff]
        %v756 = vld [vmem:[%s751 + $0x20] sm:$0xff]
        %v757 = vld [vmem:[%s751 + $0x28] sm:$0xff]
        %v758 = vld [vmem:[%s751 + $0x30] sm:$0xff]
        %v759 = vld [vmem:[%s751 + $0x38] sm:$0xff]
        %v760 = vld [vmem:[%s751 + $0x40] sm:$0xff]
        %v761 = vld [vmem:[%s751 + $0x48] sm:$0xff]
        %v762 = vld [vmem:[%s751 + $0x50] sm:$0xff]
        %v763 = vld [vmem:[%s751 + $0x58] sm:$0xff]
        %v764 = vld [vmem:[%s751 + $0x60] sm:$0xff]
        %v765 = vld [vmem:[%s751 + $0x68] sm:$0xff]
        %v766 = vld [vmem:[%s751 + $0x70] sm:$0xff]
        %v767 = vld [vmem:[%s751 + $0x78] sm:$0xff]
        %v768 = vld [vmem:[#allocation2] sm:$0xff]
        %v769 = vld [vmem:[#allocation2 + $0x8] sm:$0xff]
        %s770 = scalar_lea.vmem [#allocation6], 384
        %v771 = vld [vmem:[%s770] sm:$0xff]
        %v772 = vld [vmem:[%s770 + $0x8] sm:$0xff]
        %v773 = vld [vmem:[%s770 + $0x10] sm:$0xff]
        %v774 = vld [vmem:[%s770 + $0x18] sm:$0xff]
        %v775 = vld [vmem:[%s770 + $0x20] sm:$0xff]
        %v776 = vld [vmem:[%s770 + $0x28] sm:$0xff]
        %v777 = vld [vmem:[%s770 + $0x30] sm:$0xff]
        %v778 = vld [vmem:[%s770 + $0x38] sm:$0xff]
        %v779 = vld [vmem:[%s770 + $0x40] sm:$0xff]
        %v780 = vld [vmem:[%s770 + $0x48] sm:$0xff]
        %v781 = vld [vmem:[%s770 + $0x50] sm:$0xff]
        %v782 = vld [vmem:[%s770 + $0x58] sm:$0xff]
        %v783 = vld [vmem:[%s770 + $0x60] sm:$0xff]
        %v784 = vld [vmem:[%s770 + $0x68] sm:$0xff]
        %v785 = vld [vmem:[%s770 + $0x70] sm:$0xff]
        %v786 = vld [vmem:[%s770 + $0x78] sm:$0xff]
        %787 = vmatprep.subr.mxu0 0.0
        %788 = vmatpush1.msra.mxu0 %v786
        %789 = vmatprep.subr.mxu0 0.0
        %790 = vmatpush1.msra.mxu0 %v785
        %791 = vmatprep.subr.mxu0 0.0
        %792 = vmatpush1.msra.mxu0 %v784
        %793 = vmatprep.subr.mxu0 0.0
        %794 = vmatpush1.msra.mxu0 %v783
        %795 = vmatprep.subr.mxu0 0.0
        %796 = vmatpush1.msra.mxu0 %v782
        %797 = vmatprep.subr.mxu0 0.0
        %798 = vmatpush1.msra.mxu0 %v781
        %799 = vmatprep.subr.mxu0 0.0
        %800 = vmatpush1.msra.mxu0 %v780
        %801 = vmatprep.subr.mxu0 0.0
        %802 = vmatpush1.msra.mxu0 %v779
        %803 = vmatprep.subr.mxu0 0.0
        %804 = vmatpush1.msra.mxu0 %v778
        %805 = vmatprep.subr.mxu0 0.0
        %806 = vmatpush1.msra.mxu0 %v777
        %807 = vmatprep.subr.mxu0 0.0
        %808 = vmatpush1.msra.mxu0 %v776
        %809 = vmatprep.subr.mxu0 0.0
        %810 = vmatpush1.msra.mxu0 %v775
        %811 = vmatprep.subr.mxu0 0.0
        %812 = vmatpush1.msra.mxu0 %v774
        %813 = vmatprep.subr.mxu0 0.0
        %814 = vmatpush1.msra.mxu0 %v773
        %815 = vmatprep.subr.mxu0 0.0
        %816 = vmatpush1.msra.mxu0 %v772
        %817 = vmatprep.subr.mxu0 0.0
        %818 = vmatpush1.msra.mxu0 %v771
        %819 = vmatprep.subr.mxu0 0.0
        %820 = vmatpush2.msra.mxu0 0.0
        %821 = vmatprep.subr.mxu0 0.0
        %822 = vmatpush2.msra.mxu0 0.0
        %823 = vmatprep.subr.mxu0 0.0
        %824 = vmatpush2.msra.mxu0 0.0
        %825 = vmatprep.subr.mxu0 0.0
        %826 = vmatpush2.msra.mxu0 0.0
        %827 = vmatprep.subr.mxu0 0.0
        %828 = vmatpush2.msra.mxu0 0.0
        %829 = vmatprep.subr.mxu0 0.0
        %830 = vmatpush2.msra.mxu0 0.0
        %831 = vmatprep.subr.mxu0 0.0
        %832 = vmatpush2.msra.mxu0 0.0
        %833 = vmatprep.subr.mxu0 0.0
        %834 = vmatpush2.msra.mxu0 0.0
        %835 = vmatprep.subr.mxu0 0.0
        %836 = vmatpush2.msra.mxu0 0.0
        %837 = vmatprep.subr.mxu0 0.0
        %838 = vmatpush2.msra.mxu0 0.0
        %839 = vmatprep.subr.mxu0 0.0
        %840 = vmatpush2.msra.mxu0 0.0
        %841 = vmatprep.subr.mxu0 0.0
        %842 = vmatpush2.msra.mxu0 0.0
        %843 = vmatprep.subr.mxu0 0.0
        %844 = vmatpush2.msra.mxu0 0.0
        %845 = vmatprep.subr.mxu0 0.0
        %846 = vmatpush2.msra.mxu0 0.0
        %847 = vmatprep.subr.mxu0 0.0
        %848 = vmatpush2.msra.mxu0 0.0
        %849 = vmatprep.subr.mxu0 0.0
        %850 = vmatpush2.msra.mxu0 0.0
        %851 = vmatprep.mubr.f32.mxu0 0.0
        %852 = vmatmul.mubr.f32.gmra.mxu0 %v768
        %v853 = vpop.f32.mrf.mxu0
        %v854 = vadd.f32 0.0, %v853
        %v855 = vpop.f32.mrf.mxu0
        %856 = vmatprep.mubr.f32.mxu0 0.0
        %857 = vmatmul.mubr.f32.gmra.mxu0 %v769
        %v858 = vpop.f32.mrf.mxu0
        %v859 = vadd.f32 0.0, %v858
        %v860 = vpop.f32.mrf.mxu0
        %861 = vdwg.mxu0
        %862 = vmatprep.subr.mxu0 0.0
        %863 = vmatpush1.msra.mxu0 %v767
        %864 = vmatprep.subr.mxu0 0.0
        %865 = vmatpush1.msra.mxu0 %v766
        %866 = vmatprep.subr.mxu0 0.0
        %867 = vmatpush1.msra.mxu0 %v765
        %868 = vmatprep.subr.mxu0 0.0
        %869 = vmatpush1.msra.mxu0 %v764
        %870 = vmatprep.subr.mxu0 0.0
        %871 = vmatpush1.msra.mxu0 %v763
        %872 = vmatprep.subr.mxu0 0.0
        %873 = vmatpush1.msra.mxu0 %v762
        %874 = vmatprep.subr.mxu0 0.0
        %875 = vmatpush1.msra.mxu0 %v761
        %876 = vmatprep.subr.mxu0 0.0
        %877 = vmatpush1.msra.mxu0 %v760
        %878 = vmatprep.subr.mxu0 0.0
        %879 = vmatpush1.msra.mxu0 %v759
        %880 = vmatprep.subr.mxu0 0.0
        %881 = vmatpush1.msra.mxu0 %v758
        %882 = vmatprep.subr.mxu0 0.0
        %883 = vmatpush1.msra.mxu0 %v757
        %884 = vmatprep.subr.mxu0 0.0
        %885 = vmatpush1.msra.mxu0 %v756
        %886 = vmatprep.subr.mxu0 0.0
        %887 = vmatpush1.msra.mxu0 %v755
        %888 = vmatprep.subr.mxu0 0.0
        %889 = vmatpush1.msra.mxu0 %v754
        %890 = vmatprep.subr.mxu0 0.0
        %891 = vmatpush1.msra.mxu0 %v753
        %892 = vmatprep.subr.mxu0 0.0
        %893 = vmatpush1.msra.mxu0 %v752
        %894 = vmatprep.subr.mxu0 0.0
        %895 = vmatpush2.msra.mxu0 0.0
        %896 = vmatprep.subr.mxu0 0.0
        %897 = vmatpush2.msra.mxu0 0.0
        %898 = vmatprep.subr.mxu0 0.0
        %899 = vmatpush2.msra.mxu0 0.0
        %900 = vmatprep.subr.mxu0 0.0
        %901 = vmatpush2.msra.mxu0 0.0
        %902 = vmatprep.subr.mxu0 0.0
        %903 = vmatpush2.msra.mxu0 0.0
        %904 = vmatprep.subr.mxu0 0.0
        %905 = vmatpush2.msra.mxu0 0.0
        %906 = vmatprep.subr.mxu0 0.0
        %907 = vmatpush2.msra.mxu0 0.0
        %908 = vmatprep.subr.mxu0 0.0
        %909 = vmatpush2.msra.mxu0 0.0
        %910 = vmatprep.subr.mxu0 0.0
        %911 = vmatpush2.msra.mxu0 0.0
        %912 = vmatprep.subr.mxu0 0.0
        %913 = vmatpush2.msra.mxu0 0.0
        %914 = vmatprep.subr.mxu0 0.0
        %915 = vmatpush2.msra.mxu0 0.0
        %916 = vmatprep.subr.mxu0 0.0
        %917 = vmatpush2.msra.mxu0 0.0
        %918 = vmatprep.subr.mxu0 0.0
        %919 = vmatpush2.msra.mxu0 0.0
        %920 = vmatprep.subr.mxu0 0.0
        %921 = vmatpush2.msra.mxu0 0.0
        %922 = vmatprep.subr.mxu0 0.0
        %923 = vmatpush2.msra.mxu0 0.0
        %924 = vmatprep.subr.mxu0 0.0
        %925 = vmatpush2.msra.mxu0 0.0
        %926 = vmatprep.mubr.f32.mxu0 0.0
        %927 = vmatmul.mubr.f32.gmra.mxu0 %v747
        %v928 = vpop.f32.mrf.mxu0
        %v929 = vadd.f32 %v854, %v928
        %v930 = vpop.f32.mrf.mxu0
        %931 = vmatprep.mubr.f32.mxu0 0.0
        %932 = vmatmul.mubr.f32.gmra.mxu0 %v748
        %v933 = vpop.f32.mrf.mxu0
        %v934 = vadd.f32 %v859, %v933
        %v935 = vpop.f32.mrf.mxu0
        %936 = vdwg.mxu0
        %v937 = vld [vmem:[#allocation2 + $0x2] sm:$0xff]
        %v938 = vld [vmem:[#allocation2 + $0xa] sm:$0xff]
        %s939 = scalar_lea.vmem [#allocation6], 640
        %v940 = vld [vmem:[%s939] sm:$0xff]
        %v941 = vld [vmem:[%s939 + $0x8] sm:$0xff]
        %v942 = vld [vmem:[%s939 + $0x10] sm:$0xff]
        %v943 = vld [vmem:[%s939 + $0x18] sm:$0xff]
        %v944 = vld [vmem:[%s939 + $0x20] sm:$0xff]
        %v945 = vld [vmem:[%s939 + $0x28] sm:$0xff]
        %v946 = vld [vmem:[%s939 + $0x30] sm:$0xff]
        %v947 = vld [vmem:[%s939 + $0x38] sm:$0xff]
        %v948 = vld [vmem:[%s939 + $0x40] sm:$0xff]
        %v949 = vld [vmem:[%s939 + $0x48] sm:$0xff]
        %v950 = vld [vmem:[%s939 + $0x50] sm:$0xff]
        %v951 = vld [vmem:[%s939 + $0x58] sm:$0xff]
        %v952 = vld [vmem:[%s939 + $0x60] sm:$0xff]
        %v953 = vld [vmem:[%s939 + $0x68] sm:$0xff]
        %v954 = vld [vmem:[%s939 + $0x70] sm:$0xff]
        %v955 = vld [vmem:[%s939 + $0x78] sm:$0xff]
        %956 = vmatprep.subr.mxu0 0.0
        %957 = vmatpush1.msra.mxu0 %v955
        %958 = vmatprep.subr.mxu0 0.0
        %959 = vmatpush1.msra.mxu0 %v954
        %960 = vmatprep.subr.mxu0 0.0
        %961 = vmatpush1.msra.mxu0 %v953
        %962 = vmatprep.subr.mxu0 0.0
        %963 = vmatpush1.msra.mxu0 %v952
        %964 = vmatprep.subr.mxu0 0.0
        %965 = vmatpush1.msra.mxu0 %v951
        %966 = vmatprep.subr.mxu0 0.0
        %967 = vmatpush1.msra.mxu0 %v950
        %968 = vmatprep.subr.mxu0 0.0
        %969 = vmatpush1.msra.mxu0 %v949
        %970 = vmatprep.subr.mxu0 0.0
        %971 = vmatpush1.msra.mxu0 %v948
        %972 = vmatprep.subr.mxu0 0.0
        %973 = vmatpush1.msra.mxu0 %v947
        %974 = vmatprep.subr.mxu0 0.0
        %975 = vmatpush1.msra.mxu0 %v946
        %976 = vmatprep.subr.mxu0 0.0
        %977 = vmatpush1.msra.mxu0 %v945
        %978 = vmatprep.subr.mxu0 0.0
        %979 = vmatpush1.msra.mxu0 %v944
        %980 = vmatprep.subr.mxu0 0.0
        %981 = vmatpush1.msra.mxu0 %v943
        %982 = vmatprep.subr.mxu0 0.0
        %983 = vmatpush1.msra.mxu0 %v942
        %984 = vmatprep.subr.mxu0 0.0
        %985 = vmatpush1.msra.mxu0 %v941
        %986 = vmatprep.subr.mxu0 0.0
        %987 = vmatpush1.msra.mxu0 %v940
        %988 = vmatprep.subr.mxu0 0.0
        %989 = vmatpush2.msra.mxu0 0.0
        %990 = vmatprep.subr.mxu0 0.0
        %991 = vmatpush2.msra.mxu0 0.0
        %992 = vmatprep.subr.mxu0 0.0
        %993 = vmatpush2.msra.mxu0 0.0
        %994 = vmatprep.subr.mxu0 0.0
        %995 = vmatpush2.msra.mxu0 0.0
        %996 = vmatprep.subr.mxu0 0.0
        %997 = vmatpush2.msra.mxu0 0.0
        %998 = vmatprep.subr.mxu0 0.0
        %999 = vmatpush2.msra.mxu0 0.0
        %1000 = vmatprep.subr.mxu0 0.0
        %1001 = vmatpush2.msra.mxu0 0.0
        %1002 = vmatprep.subr.mxu0 0.0
        %1003 = vmatpush2.msra.mxu0 0.0
        %1004 = vmatprep.subr.mxu0 0.0
        %1005 = vmatpush2.msra.mxu0 0.0
        %1006 = vmatprep.subr.mxu0 0.0
        %1007 = vmatpush2.msra.mxu0 0.0
        %1008 = vmatprep.subr.mxu0 0.0
        %1009 = vmatpush2.msra.mxu0 0.0
        %1010 = vmatprep.subr.mxu0 0.0
        %1011 = vmatpush2.msra.mxu0 0.0
        %1012 = vmatprep.subr.mxu0 0.0
        %1013 = vmatpush2.msra.mxu0 0.0
        %1014 = vmatprep.subr.mxu0 0.0
        %1015 = vmatpush2.msra.mxu0 0.0
        %1016 = vmatprep.subr.mxu0 0.0
        %1017 = vmatpush2.msra.mxu0 0.0
        %1018 = vmatprep.subr.mxu0 0.0
        %1019 = vmatpush2.msra.mxu0 0.0
        %1020 = vmatprep.mubr.f32.mxu0 0.0
        %1021 = vmatmul.mubr.f32.gmra.mxu0 %v937
        %v1022 = vpop.f32.mrf.mxu0
        %v1023 = vadd.f32 0.0, %v1022
        %v1024 = vpop.f32.mrf.mxu0
        %1025 = vmatprep.mubr.f32.mxu0 0.0
        %1026 = vmatmul.mubr.f32.gmra.mxu0 %v938
        %v1027 = vpop.f32.mrf.mxu0
        %v1028 = vadd.f32 0.0, %v1027
        %v1029 = vpop.f32.mrf.mxu0
        %1030 = vdwg.mxu0
        %v1031 = vadd.f32 %v929, %v1023
        %v1032 = vadd.f32 %v934, %v1028
        %s1033 = scalar_lea.vmem [#allocation8], 1
        %v1034 = vld [vmem:[%s1033] sm:$0x1]
        %v1036 = vlaneseq
        %v1037 = vshrl.u32 %v1036, 7
        %v1038 = vsub.s32 0, %v1037
        %v1039 = vrot.slane %v1034, %v1038
        %v1041 = vadd.f32 %v1031, %v1039
        %v1042 = vadd.f32 %v1032, %v1039
        %1043 = vmatprep.subr.mxu0 0.0
        %1044 = vmatpush1.msra.mxu0 %v278
        %1045 = vmatprep.subr.mxu0 0.0
        %1046 = vmatpush1.msra.mxu0 %v277
        %1047 = vmatprep.subr.mxu0 0.0
        %1048 = vmatpush1.msra.mxu0 %v276
        %1049 = vmatprep.subr.mxu0 0.0
        %1050 = vmatpush1.msra.mxu0 %v275
        %1051 = vmatprep.subr.mxu0 0.0
        %1052 = vmatpush1.msra.mxu0 %v274
        %1053 = vmatprep.subr.mxu0 0.0
        %1054 = vmatpush1.msra.mxu0 %v273
        %1055 = vmatprep.subr.mxu0 0.0
        %1056 = vmatpush1.msra.mxu0 %v272
        %1057 = vmatprep.subr.mxu0 0.0
        %1058 = vmatpush1.msra.mxu0 %v271
        %1059 = vmatprep.subr.mxu0 0.0
        %1060 = vmatpush1.msra.mxu0 %v270
        %1061 = vmatprep.subr.mxu0 0.0
        %1062 = vmatpush1.msra.mxu0 %v269
        %1063 = vmatprep.subr.mxu0 0.0
        %1064 = vmatpush1.msra.mxu0 %v268
        %1065 = vmatprep.subr.mxu0 0.0
        %1066 = vmatpush1.msra.mxu0 %v267
        %1067 = vmatprep.subr.mxu0 0.0
        %1068 = vmatpush1.msra.mxu0 %v266
        %1069 = vmatprep.subr.mxu0 0.0
        %1070 = vmatpush1.msra.mxu0 %v265
        %1071 = vmatprep.subr.mxu0 0.0
        %1072 = vmatpush1.msra.mxu0 %v264
        %1073 = vmatprep.subr.mxu0 0.0
        %1074 = vmatpush1.msra.mxu0 %v263
        %1075 = vmatprep.subr.mxu0 0.0
        %1076 = vmatpush2.msra.mxu0 0.0
        %1077 = vmatprep.subr.mxu0 0.0
        %1078 = vmatpush2.msra.mxu0 0.0
        %1079 = vmatprep.subr.mxu0 0.0
        %1080 = vmatpush2.msra.mxu0 0.0
        %1081 = vmatprep.subr.mxu0 0.0
        %1082 = vmatpush2.msra.mxu0 0.0
        %1083 = vmatprep.subr.mxu0 0.0
        %1084 = vmatpush2.msra.mxu0 0.0
        %1085 = vmatprep.subr.mxu0 0.0
        %1086 = vmatpush2.msra.mxu0 0.0
        %1087 = vmatprep.subr.mxu0 0.0
        %1088 = vmatpush2.msra.mxu0 0.0
        %1089 = vmatprep.subr.mxu0 0.0
        %1090 = vmatpush2.msra.mxu0 0.0
        %1091 = vmatprep.subr.mxu0 0.0
        %1092 = vmatpush2.msra.mxu0 0.0
        %1093 = vmatprep.subr.mxu0 0.0
        %1094 = vmatpush2.msra.mxu0 0.0
        %1095 = vmatprep.subr.mxu0 0.0
        %1096 = vmatpush2.msra.mxu0 0.0
        %1097 = vmatprep.subr.mxu0 0.0
        %1098 = vmatpush2.msra.mxu0 0.0
        %1099 = vmatprep.subr.mxu0 0.0
        %1100 = vmatpush2.msra.mxu0 0.0
        %1101 = vmatprep.subr.mxu0 0.0
        %1102 = vmatpush2.msra.mxu0 0.0
        %1103 = vmatprep.subr.mxu0 0.0
        %1104 = vmatpush2.msra.mxu0 0.0
        %1105 = vmatprep.subr.mxu0 0.0
        %1106 = vmatpush2.msra.mxu0 0.0
        %1107 = vmatprep.mubr.f32.mxu0 0.0
        %1108 = vmatmul.mubr.f32.gmra.mxu0 %v1041
        %v1109 = vpop.f32.mrf.mxu0
        %v1110 = vadd.f32 0.0, %v1109
        %v1111 = vpop.f32.mrf.mxu0
        %1112 = vmatprep.mubr.f32.mxu0 0.0
        %1113 = vmatmul.mubr.f32.gmra.mxu0 %v1042
        %v1114 = vpop.f32.mrf.mxu0
        %v1115 = vadd.f32 0.0, %v1114
        %v1116 = vpop.f32.mrf.mxu0
        %1117 = vdwg.mxu0
        %v1118 = vadd.f32 %v1110, %v1115
        %v1119 = vrot.slane %v1118, 4
        %v1120 = vadd.f32 %v1118, %v1119
        %v1121 = vrot.slane %v1120, 2
        %v1122 = vadd.f32 %v1120, %v1121
        %v1123 = vrot.slane %v1122, 1
        %v1124 = vadd.f32 %v1122, %v1123
        %v1125 = vmul.f32 %v1041, %v1041
        %v1126 = vmul.f32 %v1042, %v1042
        %1127 = vmatprep.subr.mxu0 0.0
        %1128 = vmatpush1.msra.mxu0 %v278
        %1129 = vmatprep.subr.mxu0 0.0
        %1130 = vmatpush1.msra.mxu0 %v277
        %1131 = vmatprep.subr.mxu0 0.0
        %1132 = vmatpush1.msra.mxu0 %v276
        %1133 = vmatprep.subr.mxu0 0.0
        %1134 = vmatpush1.msra.mxu0 %v275
        %1135 = vmatprep.subr.mxu0 0.0
        %1136 = vmatpush1.msra.mxu0 %v274
        %1137 = vmatprep.subr.mxu0 0.0
        %1138 = vmatpush1.msra.mxu0 %v273
        %1139 = vmatprep.subr.mxu0 0.0
        %1140 = vmatpush1.msra.mxu0 %v272
        %1141 = vmatprep.subr.mxu0 0.0
        %1142 = vmatpush1.msra.mxu0 %v271
        %1143 = vmatprep.subr.mxu0 0.0
        %1144 = vmatpush1.msra.mxu0 %v270
        %1145 = vmatprep.subr.mxu0 0.0
        %1146 = vmatpush1.msra.mxu0 %v269
        %1147 = vmatprep.subr.mxu0 0.0
        %1148 = vmatpush1.msra.mxu0 %v268
        %1149 = vmatprep.subr.mxu0 0.0
        %1150 = vmatpush1.msra.mxu0 %v267
        %1151 = vmatprep.subr.mxu0 0.0
        %1152 = vmatpush1.msra.mxu0 %v266
        %1153 = vmatprep.subr.mxu0 0.0
        %1154 = vmatpush1.msra.mxu0 %v265
        %1155 = vmatprep.subr.mxu0 0.0
        %1156 = vmatpush1.msra.mxu0 %v264
        %1157 = vmatprep.subr.mxu0 0.0
        %1158 = vmatpush1.msra.mxu0 %v263
        %1159 = vmatprep.subr.mxu0 0.0
        %1160 = vmatpush2.msra.mxu0 0.0
        %1161 = vmatprep.subr.mxu0 0.0
        %1162 = vmatpush2.msra.mxu0 0.0
        %1163 = vmatprep.subr.mxu0 0.0
        %1164 = vmatpush2.msra.mxu0 0.0
        %1165 = vmatprep.subr.mxu0 0.0
        %1166 = vmatpush2.msra.mxu0 0.0
        %1167 = vmatprep.subr.mxu0 0.0
        %1168 = vmatpush2.msra.mxu0 0.0
        %1169 = vmatprep.subr.mxu0 0.0
        %1170 = vmatpush2.msra.mxu0 0.0
        %1171 = vmatprep.subr.mxu0 0.0
        %1172 = vmatpush2.msra.mxu0 0.0
        %1173 = vmatprep.subr.mxu0 0.0
        %1174 = vmatpush2.msra.mxu0 0.0
        %1175 = vmatprep.subr.mxu0 0.0
        %1176 = vmatpush2.msra.mxu0 0.0
        %1177 = vmatprep.subr.mxu0 0.0
        %1178 = vmatpush2.msra.mxu0 0.0
        %1179 = vmatprep.subr.mxu0 0.0
        %1180 = vmatpush2.msra.mxu0 0.0
        %1181 = vmatprep.subr.mxu0 0.0
        %1182 = vmatpush2.msra.mxu0 0.0
        %1183 = vmatprep.subr.mxu0 0.0
        %1184 = vmatpush2.msra.mxu0 0.0
        %1185 = vmatprep.subr.mxu0 0.0
        %1186 = vmatpush2.msra.mxu0 0.0
        %1187 = vmatprep.subr.mxu0 0.0
        %1188 = vmatpush2.msra.mxu0 0.0
        %1189 = vmatprep.subr.mxu0 0.0
        %1190 = vmatpush2.msra.mxu0 0.0
        %1191 = vmatprep.mubr.f32.mxu0 0.0
        %1192 = vmatmul.mubr.f32.gmra.mxu0 %v1125
        %v1193 = vpop.f32.mrf.mxu0
        %v1194 = vadd.f32 0.0, %v1193
        %v1195 = vpop.f32.mrf.mxu0
        %1196 = vmatprep.mubr.f32.mxu0 0.0
        %1197 = vmatmul.mubr.f32.gmra.mxu0 %v1126
        %v1198 = vpop.f32.mrf.mxu0
        %v1199 = vadd.f32 0.0, %v1198
        %v1200 = vpop.f32.mrf.mxu0
        %1201 = vdwg.mxu0
        %v1202 = vadd.f32 %v1194, %v1199
        %v1203 = vrot.slane %v1202, 4
        %v1204 = vadd.f32 %v1202, %v1203
        %v1205 = vrot.slane %v1204, 2
        %v1206 = vadd.f32 %v1204, %v1205
        %v1207 = vrot.slane %v1206, 1
        %v1208 = vadd.f32 %v1206, %v1207
        %v1209 = vmul.f32 %v1124, %v1124
        %v1210 = vsub.f32 %v1208, %v1209
        %v1211 = vadd.f32 %v1210, 1e-05
        %v1212 = vrsqrt.pop %v1211
        %v1213 = vsub.f32 %v1041, %v1124
        %v1214 = vsub.f32 %v1042, %v1124
        %v1215 = vmul.f32 %v1213, %v1212
        %v1216 = vmul.f32 %v1214, %v1212
        %v1217 = vadd.f32 %v1215, %v279
        %v1218 = vadd.f32 %v1216, %v280
        %1219 = vst [vmem:[#allocation2 + $0x1] sm:$0xff] %v1217
        %1220 = vst [vmem:[#allocation2 + $0x9] sm:$0xff] %v1218
        %s1221 = scalar_lea.vmem [#allocation6], 896
        %v1222 = vld [vmem:[%s1221] sm:$0xff]
        %v1223 = vld [vmem:[%s1221 + $0x8] sm:$0xff]
        %v1224 = vld [vmem:[%s1221 + $0x10] sm:$0xff]
        %v1225 = vld [vmem:[%s1221 + $0x18] sm:$0xff]
        %v1226 = vld [vmem:[%s1221 + $0x20] sm:$0xff]
        %v1227 = vld [vmem:[%s1221 + $0x28] sm:$0xff]
        %v1228 = vld [vmem:[%s1221 + $0x30] sm:$0xff]
        %v1229 = vld [vmem:[%s1221 + $0x38] sm:$0xff]
        %v1230 = vld [vmem:[%s1221 + $0x40] sm:$0xff]
        %v1231 = vld [vmem:[%s1221 + $0x48] sm:$0xff]
        %v1232 = vld [vmem:[%s1221 + $0x50] sm:$0xff]
        %v1233 = vld [vmem:[%s1221 + $0x58] sm:$0xff]
        %v1234 = vld [vmem:[%s1221 + $0x60] sm:$0xff]
        %v1235 = vld [vmem:[%s1221 + $0x68] sm:$0xff]
        %v1236 = vld [vmem:[%s1221 + $0x70] sm:$0xff]
        %v1237 = vld [vmem:[%s1221 + $0x78] sm:$0xff]
        %v1238 = vld [vmem:[#allocation2] sm:$0xff]
        %v1239 = vld [vmem:[#allocation2 + $0x8] sm:$0xff]
        %s1240 = scalar_lea.vmem [#allocation6], 768
        %v1241 = vld [vmem:[%s1240] sm:$0xff]
        %v1242 = vld [vmem:[%s1240 + $0x8] sm:$0xff]
        %v1243 = vld [vmem:[%s1240 + $0x10] sm:$0xff]
        %v1244 = vld [vmem:[%s1240 + $0x18] sm:$0xff]
        %v1245 = vld [vmem:[%s1240 + $0x20] sm:$0xff]
        %v1246 = vld [vmem:[%s1240 + $0x28] sm:$0xff]
        %v1247 = vld [vmem:[%s1240 + $0x30] sm:$0xff]
        %v1248 = vld [vmem:[%s1240 + $0x38] sm:$0xff]
        %v1249 = vld [vmem:[%s1240 + $0x40] sm:$0xff]
        %v1250 = vld [vmem:[%s1240 + $0x48] sm:$0xff]
        %v1251 = vld [vmem:[%s1240 + $0x50] sm:$0xff]
        %v1252 = vld [vmem:[%s1240 + $0x58] sm:$0xff]
        %v1253 = vld [vmem:[%s1240 + $0x60] sm:$0xff]
        %v1254 = vld [vmem:[%s1240 + $0x68] sm:$0xff]
        %v1255 = vld [vmem:[%s1240 + $0x70] sm:$0xff]
        %v1256 = vld [vmem:[%s1240 + $0x78] sm:$0xff]
        %1257 = vmatprep.subr.mxu0 0.0
        %1258 = vmatpush1.msra.mxu0 %v1256
        %1259 = vmatprep.subr.mxu0 0.0
        %1260 = vmatpush1.msra.mxu0 %v1255
        %1261 = vmatprep.subr.mxu0 0.0
        %1262 = vmatpush1.msra.mxu0 %v1254
        %1263 = vmatprep.subr.mxu0 0.0
        %1264 = vmatpush1.msra.mxu0 %v1253
        %1265 = vmatprep.subr.mxu0 0.0
        %1266 = vmatpush1.msra.mxu0 %v1252
        %1267 = vmatprep.subr.mxu0 0.0
        %1268 = vmatpush1.msra.mxu0 %v1251
        %1269 = vmatprep.subr.mxu0 0.0
        %1270 = vmatpush1.msra.mxu0 %v1250
        %1271 = vmatprep.subr.mxu0 0.0
        %1272 = vmatpush1.msra.mxu0 %v1249
        %1273 = vmatprep.subr.mxu0 0.0
        %1274 = vmatpush1.msra.mxu0 %v1248
        %1275 = vmatprep.subr.mxu0 0.0
        %1276 = vmatpush1.msra.mxu0 %v1247
        %1277 = vmatprep.subr.mxu0 0.0
        %1278 = vmatpush1.msra.mxu0 %v1246
        %1279 = vmatprep.subr.mxu0 0.0
        %1280 = vmatpush1.msra.mxu0 %v1245
        %1281 = vmatprep.subr.mxu0 0.0
        %1282 = vmatpush1.msra.mxu0 %v1244
        %1283 = vmatprep.subr.mxu0 0.0
        %1284 = vmatpush1.msra.mxu0 %v1243
        %1285 = vmatprep.subr.mxu0 0.0
        %1286 = vmatpush1.msra.mxu0 %v1242
        %1287 = vmatprep.subr.mxu0 0.0
        %1288 = vmatpush1.msra.mxu0 %v1241
        %1289 = vmatprep.subr.mxu0 0.0
        %1290 = vmatpush2.msra.mxu0 0.0
        %1291 = vmatprep.subr.mxu0 0.0
        %1292 = vmatpush2.msra.mxu0 0.0
        %1293 = vmatprep.subr.mxu0 0.0
        %1294 = vmatpush2.msra.mxu0 0.0
        %1295 = vmatprep.subr.mxu0 0.0
        %1296 = vmatpush2.msra.mxu0 0.0
        %1297 = vmatprep.subr.mxu0 0.0
        %1298 = vmatpush2.msra.mxu0 0.0
        %1299 = vmatprep.subr.mxu0 0.0
        %1300 = vmatpush2.msra.mxu0 0.0
        %1301 = vmatprep.subr.mxu0 0.0
        %1302 = vmatpush2.msra.mxu0 0.0
        %1303 = vmatprep.subr.mxu0 0.0
        %1304 = vmatpush2.msra.mxu0 0.0
        %1305 = vmatprep.subr.mxu0 0.0
        %1306 = vmatpush2.msra.mxu0 0.0
        %1307 = vmatprep.subr.mxu0 0.0
        %1308 = vmatpush2.msra.mxu0 0.0
        %1309 = vmatprep.subr.mxu0 0.0
        %1310 = vmatpush2.msra.mxu0 0.0
        %1311 = vmatprep.subr.mxu0 0.0
        %1312 = vmatpush2.msra.mxu0 0.0
        %1313 = vmatprep.subr.mxu0 0.0
        %1314 = vmatpush2.msra.mxu0 0.0
        %1315 = vmatprep.subr.mxu0 0.0
        %1316 = vmatpush2.msra.mxu0 0.0
        %1317 = vmatprep.subr.mxu0 0.0
        %1318 = vmatpush2.msra.mxu0 0.0
        %1319 = vmatprep.subr.mxu0 0.0
        %1320 = vmatpush2.msra.mxu0 0.0
        %1321 = vmatprep.mubr.f32.mxu0 0.0
        %1322 = vmatmul.mubr.f32.gmra.mxu0 %v1238
        %v1323 = vpop.f32.mrf.mxu0
        %v1324 = vadd.f32 0.0, %v1323
        %v1325 = vpop.f32.mrf.mxu0
        %1326 = vmatprep.mubr.f32.mxu0 0.0
        %1327 = vmatmul.mubr.f32.gmra.mxu0 %v1239
        %v1328 = vpop.f32.mrf.mxu0
        %v1329 = vadd.f32 0.0, %v1328
        %v1330 = vpop.f32.mrf.mxu0
        %1331 = vdwg.mxu0
        %1332 = vmatprep.subr.mxu0 0.0
        %1333 = vmatpush1.msra.mxu0 %v1237
        %1334 = vmatprep.subr.mxu0 0.0
        %1335 = vmatpush1.msra.mxu0 %v1236
        %1336 = vmatprep.subr.mxu0 0.0
        %1337 = vmatpush1.msra.mxu0 %v1235
        %1338 = vmatprep.subr.mxu0 0.0
        %1339 = vmatpush1.msra.mxu0 %v1234
        %1340 = vmatprep.subr.mxu0 0.0
        %1341 = vmatpush1.msra.mxu0 %v1233
        %1342 = vmatprep.subr.mxu0 0.0
        %1343 = vmatpush1.msra.mxu0 %v1232
        %1344 = vmatprep.subr.mxu0 0.0
        %1345 = vmatpush1.msra.mxu0 %v1231
        %1346 = vmatprep.subr.mxu0 0.0
        %1347 = vmatpush1.msra.mxu0 %v1230
        %1348 = vmatprep.subr.mxu0 0.0
        %1349 = vmatpush1.msra.mxu0 %v1229
        %1350 = vmatprep.subr.mxu0 0.0
        %1351 = vmatpush1.msra.mxu0 %v1228
        %1352 = vmatprep.subr.mxu0 0.0
        %1353 = vmatpush1.msra.mxu0 %v1227
        %1354 = vmatprep.subr.mxu0 0.0
        %1355 = vmatpush1.msra.mxu0 %v1226
        %1356 = vmatprep.subr.mxu0 0.0
        %1357 = vmatpush1.msra.mxu0 %v1225
        %1358 = vmatprep.subr.mxu0 0.0
        %1359 = vmatpush1.msra.mxu0 %v1224
        %1360 = vmatprep.subr.mxu0 0.0
        %1361 = vmatpush1.msra.mxu0 %v1223
        %1362 = vmatprep.subr.mxu0 0.0
        %1363 = vmatpush1.msra.mxu0 %v1222
        %1364 = vmatprep.subr.mxu0 0.0
        %1365 = vmatpush2.msra.mxu0 0.0
        %1366 = vmatprep.subr.mxu0 0.0
        %1367 = vmatpush2.msra.mxu0 0.0
        %1368 = vmatprep.subr.mxu0 0.0
        %1369 = vmatpush2.msra.mxu0 0.0
        %1370 = vmatprep.subr.mxu0 0.0
        %1371 = vmatpush2.msra.mxu0 0.0
        %1372 = vmatprep.subr.mxu0 0.0
        %1373 = vmatpush2.msra.mxu0 0.0
        %1374 = vmatprep.subr.mxu0 0.0
        %1375 = vmatpush2.msra.mxu0 0.0
        %1376 = vmatprep.subr.mxu0 0.0
        %1377 = vmatpush2.msra.mxu0 0.0
        %1378 = vmatprep.subr.mxu0 0.0
        %1379 = vmatpush2.msra.mxu0 0.0
        %1380 = vmatprep.subr.mxu0 0.0
        %1381 = vmatpush2.msra.mxu0 0.0
        %1382 = vmatprep.subr.mxu0 0.0
        %1383 = vmatpush2.msra.mxu0 0.0
        %1384 = vmatprep.subr.mxu0 0.0
        %1385 = vmatpush2.msra.mxu0 0.0
        %1386 = vmatprep.subr.mxu0 0.0
        %1387 = vmatpush2.msra.mxu0 0.0
        %1388 = vmatprep.subr.mxu0 0.0
        %1389 = vmatpush2.msra.mxu0 0.0
        %1390 = vmatprep.subr.mxu0 0.0
        %1391 = vmatpush2.msra.mxu0 0.0
        %1392 = vmatprep.subr.mxu0 0.0
        %1393 = vmatpush2.msra.mxu0 0.0
        %1394 = vmatprep.subr.mxu0 0.0
        %1395 = vmatpush2.msra.mxu0 0.0
        %1396 = vmatprep.mubr.f32.mxu0 0.0
        %1397 = vmatmul.mubr.f32.gmra.mxu0 %v1217
        %v1398 = vpop.f32.mrf.mxu0
        %v1399 = vadd.f32 %v1324, %v1398
        %v1400 = vpop.f32.mrf.mxu0
        %1401 = vmatprep.mubr.f32.mxu0 0.0
        %1402 = vmatmul.mubr.f32.gmra.mxu0 %v1218
        %v1403 = vpop.f32.mrf.mxu0
        %v1404 = vadd.f32 %v1329, %v1403
        %v1405 = vpop.f32.mrf.mxu0
        %1406 = vdwg.mxu0
        %v1407 = vld [vmem:[#allocation2 + $0x2] sm:$0xff]
        %v1408 = vld [vmem:[#allocation2 + $0xa] sm:$0xff]
        %s1409 = scalar_lea.vmem [#allocation6], 1024
        %v1410 = vld [vmem:[%s1409] sm:$0xff]
        %v1411 = vld [vmem:[%s1409 + $0x8] sm:$0xff]
        %v1412 = vld [vmem:[%s1409 + $0x10] sm:$0xff]
        %v1413 = vld [vmem:[%s1409 + $0x18] sm:$0xff]
        %v1414 = vld [vmem:[%s1409 + $0x20] sm:$0xff]
        %v1415 = vld [vmem:[%s1409 + $0x28] sm:$0xff]
        %v1416 = vld [vmem:[%s1409 + $0x30] sm:$0xff]
        %v1417 = vld [vmem:[%s1409 + $0x38] sm:$0xff]
        %v1418 = vld [vmem:[%s1409 + $0x40] sm:$0xff]
        %v1419 = vld [vmem:[%s1409 + $0x48] sm:$0xff]
        %v1420 = vld [vmem:[%s1409 + $0x50] sm:$0xff]
        %v1421 = vld [vmem:[%s1409 + $0x58] sm:$0xff]
        %v1422 = vld [vmem:[%s1409 + $0x60] sm:$0xff]
        %v1423 = vld [vmem:[%s1409 + $0x68] sm:$0xff]
        %v1424 = vld [vmem:[%s1409 + $0x70] sm:$0xff]
        %v1425 = vld [vmem:[%s1409 + $0x78] sm:$0xff]
        %1426 = vmatprep.subr.mxu0 0.0
        %1427 = vmatpush1.msra.mxu0 %v1425
        %1428 = vmatprep.subr.mxu0 0.0
        %1429 = vmatpush1.msra.mxu0 %v1424
        %1430 = vmatprep.subr.mxu0 0.0
        %1431 = vmatpush1.msra.mxu0 %v1423
        %1432 = vmatprep.subr.mxu0 0.0
        %1433 = vmatpush1.msra.mxu0 %v1422
        %1434 = vmatprep.subr.mxu0 0.0
        %1435 = vmatpush1.msra.mxu0 %v1421
        %1436 = vmatprep.subr.mxu0 0.0
        %1437 = vmatpush1.msra.mxu0 %v1420
        %1438 = vmatprep.subr.mxu0 0.0
        %1439 = vmatpush1.msra.mxu0 %v1419
        %1440 = vmatprep.subr.mxu0 0.0
        %1441 = vmatpush1.msra.mxu0 %v1418
        %1442 = vmatprep.subr.mxu0 0.0
        %1443 = vmatpush1.msra.mxu0 %v1417
        %1444 = vmatprep.subr.mxu0 0.0
        %1445 = vmatpush1.msra.mxu0 %v1416
        %1446 = vmatprep.subr.mxu0 0.0
        %1447 = vmatpush1.msra.mxu0 %v1415
        %1448 = vmatprep.subr.mxu0 0.0
        %1449 = vmatpush1.msra.mxu0 %v1414
        %1450 = vmatprep.subr.mxu0 0.0
        %1451 = vmatpush1.msra.mxu0 %v1413
        %1452 = vmatprep.subr.mxu0 0.0
        %1453 = vmatpush1.msra.mxu0 %v1412
        %1454 = vmatprep.subr.mxu0 0.0
        %1455 = vmatpush1.msra.mxu0 %v1411
        %1456 = vmatprep.subr.mxu0 0.0
        %1457 = vmatpush1.msra.mxu0 %v1410
        %1458 = vmatprep.subr.mxu0 0.0
        %1459 = vmatpush2.msra.mxu0 0.0
        %1460 = vmatprep.subr.mxu0 0.0
        %1461 = vmatpush2.msra.mxu0 0.0
        %1462 = vmatprep.subr.mxu0 0.0
        %1463 = vmatpush2.msra.mxu0 0.0
        %1464 = vmatprep.subr.mxu0 0.0
        %1465 = vmatpush2.msra.mxu0 0.0
        %1466 = vmatprep.subr.mxu0 0.0
        %1467 = vmatpush2.msra.mxu0 0.0
        %1468 = vmatprep.subr.mxu0 0.0
        %1469 = vmatpush2.msra.mxu0 0.0
        %1470 = vmatprep.subr.mxu0 0.0
        %1471 = vmatpush2.msra.mxu0 0.0
        %1472 = vmatprep.subr.mxu0 0.0
        %1473 = vmatpush2.msra.mxu0 0.0
        %1474 = vmatprep.subr.mxu0 0.0
        %1475 = vmatpush2.msra.mxu0 0.0
        %1476 = vmatprep.subr.mxu0 0.0
        %1477 = vmatpush2.msra.mxu0 0.0
        %1478 = vmatprep.subr.mxu0 0.0
        %1479 = vmatpush2.msra.mxu0 0.0
        %1480 = vmatprep.subr.mxu0 0.0
        %1481 = vmatpush2.msra.mxu0 0.0
        %1482 = vmatprep.subr.mxu0 0.0
        %1483 = vmatpush2.msra.mxu0 0.0
        %1484 = vmatprep.subr.mxu0 0.0
        %1485 = vmatpush2.msra.mxu0 0.0
        %1486 = vmatprep.subr.mxu0 0.0
        %1487 = vmatpush2.msra.mxu0 0.0
        %1488 = vmatprep.subr.mxu0 0.0
        %1489 = vmatpush2.msra.mxu0 0.0
        %1490 = vmatprep.mubr.f32.mxu0 0.0
        %1491 = vmatmul.mubr.f32.gmra.mxu0 %v1407
        %v1492 = vpop.f32.mrf.mxu0
        %v1493 = vadd.f32 0.0, %v1492
        %v1494 = vpop.f32.mrf.mxu0
        %1495 = vmatprep.mubr.f32.mxu0 0.0
        %1496 = vmatmul.mubr.f32.gmra.mxu0 %v1408
        %v1497 = vpop.f32.mrf.mxu0
        %v1498 = vadd.f32 0.0, %v1497
        %v1499 = vpop.f32.mrf.mxu0
        %1500 = vdwg.mxu0
        %v1501 = vadd.f32 %v1399, %v1493
        %v1502 = vadd.f32 %v1404, %v1498
        %s1503 = scalar_lea.vmem [#allocation8], 2
        %v1504 = vld [vmem:[%s1503] sm:$0x1]
        %v1506 = vlaneseq
        %v1507 = vshrl.u32 %v1506, 7
        %v1508 = vsub.s32 0, %v1507
        %v1509 = vrot.slane %v1504, %v1508
        %v1511 = vadd.f32 %v1501, %v1509
        %v1512 = vadd.f32 %v1502, %v1509
        %1513 = vmatprep.subr.mxu0 0.0
        %1514 = vmatpush1.msra.mxu0 %v278
        %1515 = vmatprep.subr.mxu0 0.0
        %1516 = vmatpush1.msra.mxu0 %v277
        %1517 = vmatprep.subr.mxu0 0.0
        %1518 = vmatpush1.msra.mxu0 %v276
        %1519 = vmatprep.subr.mxu0 0.0
        %1520 = vmatpush1.msra.mxu0 %v275
        %1521 = vmatprep.subr.mxu0 0.0
        %1522 = vmatpush1.msra.mxu0 %v274
        %1523 = vmatprep.subr.mxu0 0.0
        %1524 = vmatpush1.msra.mxu0 %v273
        %1525 = vmatprep.subr.mxu0 0.0
        %1526 = vmatpush1.msra.mxu0 %v272
        %1527 = vmatprep.subr.mxu0 0.0
        %1528 = vmatpush1.msra.mxu0 %v271
        %1529 = vmatprep.subr.mxu0 0.0
        %1530 = vmatpush1.msra.mxu0 %v270
        %1531 = vmatprep.subr.mxu0 0.0
        %1532 = vmatpush1.msra.mxu0 %v269
        %1533 = vmatprep.subr.mxu0 0.0
        %1534 = vmatpush1.msra.mxu0 %v268
        %1535 = vmatprep.subr.mxu0 0.0
        %1536 = vmatpush1.msra.mxu0 %v267
        %1537 = vmatprep.subr.mxu0 0.0
        %1538 = vmatpush1.msra.mxu0 %v266
        %1539 = vmatprep.subr.mxu0 0.0
        %1540 = vmatpush1.msra.mxu0 %v265
        %1541 = vmatprep.subr.mxu0 0.0
        %1542 = vmatpush1.msra.mxu0 %v264
        %1543 = vmatprep.subr.mxu0 0.0
        %1544 = vmatpush1.msra.mxu0 %v263
        %1545 = vmatprep.subr.mxu0 0.0
        %1546 = vmatpush2.msra.mxu0 0.0
        %1547 = vmatprep.subr.mxu0 0.0
        %1548 = vmatpush2.msra.mxu0 0.0
        %1549 = vmatprep.subr.mxu0 0.0
        %1550 = vmatpush2.msra.mxu0 0.0
        %1551 = vmatprep.subr.mxu0 0.0
        %1552 = vmatpush2.msra.mxu0 0.0
        %1553 = vmatprep.subr.mxu0 0.0
        %1554 = vmatpush2.msra.mxu0 0.0
        %1555 = vmatprep.subr.mxu0 0.0
        %1556 = vmatpush2.msra.mxu0 0.0
        %1557 = vmatprep.subr.mxu0 0.0
        %1558 = vmatpush2.msra.mxu0 0.0
        %1559 = vmatprep.subr.mxu0 0.0
        %1560 = vmatpush2.msra.mxu0 0.0
        %1561 = vmatprep.subr.mxu0 0.0
        %1562 = vmatpush2.msra.mxu0 0.0
        %1563 = vmatprep.subr.mxu0 0.0
        %1564 = vmatpush2.msra.mxu0 0.0
        %1565 = vmatprep.subr.mxu0 0.0
        %1566 = vmatpush2.msra.mxu0 0.0
        %1567 = vmatprep.subr.mxu0 0.0
        %1568 = vmatpush2.msra.mxu0 0.0
        %1569 = vmatprep.subr.mxu0 0.0
        %1570 = vmatpush2.msra.mxu0 0.0
        %1571 = vmatprep.subr.mxu0 0.0
        %1572 = vmatpush2.msra.mxu0 0.0
        %1573 = vmatprep.subr.mxu0 0.0
        %1574 = vmatpush2.msra.mxu0 0.0
        %1575 = vmatprep.subr.mxu0 0.0
        %1576 = vmatpush2.msra.mxu0 0.0
        %1577 = vmatprep.mubr.f32.mxu0 0.0
        %1578 = vmatmul.mubr.f32.gmra.mxu0 %v1511
        %v1579 = vpop.f32.mrf.mxu0
        %v1580 = vadd.f32 0.0, %v1579
        %v1581 = vpop.f32.mrf.mxu0
        %1582 = vmatprep.mubr.f32.mxu0 0.0
        %1583 = vmatmul.mubr.f32.gmra.mxu0 %v1512
        %v1584 = vpop.f32.mrf.mxu0
        %v1585 = vadd.f32 0.0, %v1584
        %v1586 = vpop.f32.mrf.mxu0
        %1587 = vdwg.mxu0
        %v1588 = vadd.f32 %v1580, %v1585
        %v1589 = vrot.slane %v1588, 4
        %v1590 = vadd.f32 %v1588, %v1589
        %v1591 = vrot.slane %v1590, 2
        %v1592 = vadd.f32 %v1590, %v1591
        %v1593 = vrot.slane %v1592, 1
        %v1594 = vadd.f32 %v1592, %v1593
        %v1595 = vmul.f32 %v1511, %v1511
        %v1596 = vmul.f32 %v1512, %v1512
        %1597 = vmatprep.subr.mxu0 0.0
        %1598 = vmatpush1.msra.mxu0 %v278
        %1599 = vmatprep.subr.mxu0 0.0
        %1600 = vmatpush1.msra.mxu0 %v277
        %1601 = vmatprep.subr.mxu0 0.0
        %1602 = vmatpush1.msra.mxu0 %v276
        %1603 = vmatprep.subr.mxu0 0.0
        %1604 = vmatpush1.msra.mxu0 %v275
        %1605 = vmatprep.subr.mxu0 0.0
        %1606 = vmatpush1.msra.mxu0 %v274
        %1607 = vmatprep.subr.mxu0 0.0
        %1608 = vmatpush1.msra.mxu0 %v273
        %1609 = vmatprep.subr.mxu0 0.0
        %1610 = vmatpush1.msra.mxu0 %v272
        %1611 = vmatprep.subr.mxu0 0.0
        %1612 = vmatpush1.msra.mxu0 %v271
        %1613 = vmatprep.subr.mxu0 0.0
        %1614 = vmatpush1.msra.mxu0 %v270
        %1615 = vmatprep.subr.mxu0 0.0
        %1616 = vmatpush1.msra.mxu0 %v269
        %1617 = vmatprep.subr.mxu0 0.0
        %1618 = vmatpush1.msra.mxu0 %v268
        %1619 = vmatprep.subr.mxu0 0.0
        %1620 = vmatpush1.msra.mxu0 %v267
        %1621 = vmatprep.subr.mxu0 0.0
        %1622 = vmatpush1.msra.mxu0 %v266
        %1623 = vmatprep.subr.mxu0 0.0
        %1624 = vmatpush1.msra.mxu0 %v265
        %1625 = vmatprep.subr.mxu0 0.0
        %1626 = vmatpush1.msra.mxu0 %v264
        %1627 = vmatprep.subr.mxu0 0.0
        %1628 = vmatpush1.msra.mxu0 %v263
        %1629 = vmatprep.subr.mxu0 0.0
        %1630 = vmatpush2.msra.mxu0 0.0
        %1631 = vmatprep.subr.mxu0 0.0
        %1632 = vmatpush2.msra.mxu0 0.0
        %1633 = vmatprep.subr.mxu0 0.0
        %1634 = vmatpush2.msra.mxu0 0.0
        %1635 = vmatprep.subr.mxu0 0.0
        %1636 = vmatpush2.msra.mxu0 0.0
        %1637 = vmatprep.subr.mxu0 0.0
        %1638 = vmatpush2.msra.mxu0 0.0
        %1639 = vmatprep.subr.mxu0 0.0
        %1640 = vmatpush2.msra.mxu0 0.0
        %1641 = vmatprep.subr.mxu0 0.0
        %1642 = vmatpush2.msra.mxu0 0.0
        %1643 = vmatprep.subr.mxu0 0.0
        %1644 = vmatpush2.msra.mxu0 0.0
        %1645 = vmatprep.subr.mxu0 0.0
        %1646 = vmatpush2.msra.mxu0 0.0
        %1647 = vmatprep.subr.mxu0 0.0
        %1648 = vmatpush2.msra.mxu0 0.0
        %1649 = vmatprep.subr.mxu0 0.0
        %1650 = vmatpush2.msra.mxu0 0.0
        %1651 = vmatprep.subr.mxu0 0.0
        %1652 = vmatpush2.msra.mxu0 0.0
        %1653 = vmatprep.subr.mxu0 0.0
        %1654 = vmatpush2.msra.mxu0 0.0
        %1655 = vmatprep.subr.mxu0 0.0
        %1656 = vmatpush2.msra.mxu0 0.0
        %1657 = vmatprep.subr.mxu0 0.0
        %1658 = vmatpush2.msra.mxu0 0.0
        %1659 = vmatprep.subr.mxu0 0.0
        %1660 = vmatpush2.msra.mxu0 0.0
        %1661 = vmatprep.mubr.f32.mxu0 0.0
        %1662 = vmatmul.mubr.f32.gmra.mxu0 %v1595
        %v1663 = vpop.f32.mrf.mxu0
        %v1664 = vadd.f32 0.0, %v1663
        %v1665 = vpop.f32.mrf.mxu0
        %1666 = vmatprep.mubr.f32.mxu0 0.0
        %1667 = vmatmul.mubr.f32.gmra.mxu0 %v1596
        %v1668 = vpop.f32.mrf.mxu0
        %v1669 = vadd.f32 0.0, %v1668
        %v1670 = vpop.f32.mrf.mxu0
        %1671 = vdwg.mxu0
        %v1672 = vadd.f32 %v1664, %v1669
        %v1673 = vrot.slane %v1672, 4
        %v1674 = vadd.f32 %v1672, %v1673
        %v1675 = vrot.slane %v1674, 2
        %v1676 = vadd.f32 %v1674, %v1675
        %v1677 = vrot.slane %v1676, 1
        %v1678 = vadd.f32 %v1676, %v1677
        %v1679 = vmul.f32 %v1594, %v1594
        %v1680 = vsub.f32 %v1678, %v1679
        %v1681 = vadd.f32 %v1680, 1e-05
        %v1682 = vrsqrt.pop %v1681
        %v1683 = vsub.f32 %v1511, %v1594
        %v1684 = vsub.f32 %v1512, %v1594
        %v1685 = vmul.f32 %v1683, %v1682
        %v1686 = vmul.f32 %v1684, %v1682
        %v1687 = vmax.f32 %v1685, 0.0
        %v1688 = vmax.f32 %v1686, 0.0
        %1689 = vst [vmem:[#allocation2 + $0x1] sm:$0xff] %v1687
        %1690 = vst [vmem:[#allocation2 + $0x9] sm:$0xff] %v1688
        %s1691 = scalar_lea.vmem [#allocation6], 1280
        %v1692 = vld [vmem:[%s1691] sm:$0xff]
        %v1693 = vld [vmem:[%s1691 + $0x8] sm:$0xff]
        %v1694 = vld [vmem:[%s1691 + $0x10] sm:$0xff]
        %v1695 = vld [vmem:[%s1691 + $0x18] sm:$0xff]
        %v1696 = vld [vmem:[%s1691 + $0x20] sm:$0xff]
        %v1697 = vld [vmem:[%s1691 + $0x28] sm:$0xff]
        %v1698 = vld [vmem:[%s1691 + $0x30] sm:$0xff]
        %v1699 = vld [vmem:[%s1691 + $0x38] sm:$0xff]
        %v1700 = vld [vmem:[%s1691 + $0x40] sm:$0xff]
        %v1701 = vld [vmem:[%s1691 + $0x48] sm:$0xff]
        %v1702 = vld [vmem:[%s1691 + $0x50] sm:$0xff]
        %v1703 = vld [vmem:[%s1691 + $0x58] sm:$0xff]
        %v1704 = vld [vmem:[%s1691 + $0x60] sm:$0xff]
        %v1705 = vld [vmem:[%s1691 + $0x68] sm:$0xff]
        %v1706 = vld [vmem:[%s1691 + $0x70] sm:$0xff]
        %v1707 = vld [vmem:[%s1691 + $0x78] sm:$0xff]
        %v1708 = vld [vmem:[#allocation2] sm:$0xff]
        %v1709 = vld [vmem:[#allocation2 + $0x8] sm:$0xff]
        %s1710 = scalar_lea.vmem [#allocation6], 1152
        %v1711 = vld [vmem:[%s1710] sm:$0xff]
        %v1712 = vld [vmem:[%s1710 + $0x8] sm:$0xff]
        %v1713 = vld [vmem:[%s1710 + $0x10] sm:$0xff]
        %v1714 = vld [vmem:[%s1710 + $0x18] sm:$0xff]
        %v1715 = vld [vmem:[%s1710 + $0x20] sm:$0xff]
        %v1716 = vld [vmem:[%s1710 + $0x28] sm:$0xff]
        %v1717 = vld [vmem:[%s1710 + $0x30] sm:$0xff]
        %v1718 = vld [vmem:[%s1710 + $0x38] sm:$0xff]
        %v1719 = vld [vmem:[%s1710 + $0x40] sm:$0xff]
        %v1720 = vld [vmem:[%s1710 + $0x48] sm:$0xff]
        %v1721 = vld [vmem:[%s1710 + $0x50] sm:$0xff]
        %v1722 = vld [vmem:[%s1710 + $0x58] sm:$0xff]
        %v1723 = vld [vmem:[%s1710 + $0x60] sm:$0xff]
        %v1724 = vld [vmem:[%s1710 + $0x68] sm:$0xff]
        %v1725 = vld [vmem:[%s1710 + $0x70] sm:$0xff]
        %v1726 = vld [vmem:[%s1710 + $0x78] sm:$0xff]
        %1727 = vmatprep.subr.mxu0 0.0
        %1728 = vmatpush1.msra.mxu0 %v1726
        %1729 = vmatprep.subr.mxu0 0.0
        %1730 = vmatpush1.msra.mxu0 %v1725
        %1731 = vmatprep.subr.mxu0 0.0
        %1732 = vmatpush1.msra.mxu0 %v1724
        %1733 = vmatprep.subr.mxu0 0.0
        %1734 = vmatpush1.msra.mxu0 %v1723
        %1735 = vmatprep.subr.mxu0 0.0
        %1736 = vmatpush1.msra.mxu0 %v1722
        %1737 = vmatprep.subr.mxu0 0.0
        %1738 = vmatpush1.msra.mxu0 %v1721
        %1739 = vmatprep.subr.mxu0 0.0
        %1740 = vmatpush1.msra.mxu0 %v1720
        %1741 = vmatprep.subr.mxu0 0.0
        %1742 = vmatpush1.msra.mxu0 %v1719
        %1743 = vmatprep.subr.mxu0 0.0
        %1744 = vmatpush1.msra.mxu0 %v1718
        %1745 = vmatprep.subr.mxu0 0.0
        %1746 = vmatpush1.msra.mxu0 %v1717
        %1747 = vmatprep.subr.mxu0 0.0
        %1748 = vmatpush1.msra.mxu0 %v1716
        %1749 = vmatprep.subr.mxu0 0.0
        %1750 = vmatpush1.msra.mxu0 %v1715
        %1751 = vmatprep.subr.mxu0 0.0
        %1752 = vmatpush1.msra.mxu0 %v1714
        %1753 = vmatprep.subr.mxu0 0.0
        %1754 = vmatpush1.msra.mxu0 %v1713
        %1755 = vmatprep.subr.mxu0 0.0
        %1756 = vmatpush1.msra.mxu0 %v1712
        %1757 = vmatprep.subr.mxu0 0.0
        %1758 = vmatpush1.msra.mxu0 %v1711
        %1759 = vmatprep.subr.mxu0 0.0
        %1760 = vmatpush2.msra.mxu0 0.0
        %1761 = vmatprep.subr.mxu0 0.0
        %1762 = vmatpush2.msra.mxu0 0.0
        %1763 = vmatprep.subr.mxu0 0.0
        %1764 = vmatpush2.msra.mxu0 0.0
        %1765 = vmatprep.subr.mxu0 0.0
        %1766 = vmatpush2.msra.mxu0 0.0
        %1767 = vmatprep.subr.mxu0 0.0
        %1768 = vmatpush2.msra.mxu0 0.0
        %1769 = vmatprep.subr.mxu0 0.0
        %1770 = vmatpush2.msra.mxu0 0.0
        %1771 = vmatprep.subr.mxu0 0.0
        %1772 = vmatpush2.msra.mxu0 0.0
        %1773 = vmatprep.subr.mxu0 0.0
        %1774 = vmatpush2.msra.mxu0 0.0
        %1775 = vmatprep.subr.mxu0 0.0
        %1776 = vmatpush2.msra.mxu0 0.0
        %1777 = vmatprep.subr.mxu0 0.0
        %1778 = vmatpush2.msra.mxu0 0.0
        %1779 = vmatprep.subr.mxu0 0.0
        %1780 = vmatpush2.msra.mxu0 0.0
        %1781 = vmatprep.subr.mxu0 0.0
        %1782 = vmatpush2.msra.mxu0 0.0
        %1783 = vmatprep.subr.mxu0 0.0
        %1784 = vmatpush2.msra.mxu0 0.0
        %1785 = vmatprep.subr.mxu0 0.0
        %1786 = vmatpush2.msra.mxu0 0.0
        %1787 = vmatprep.subr.mxu0 0.0
        %1788 = vmatpush2.msra.mxu0 0.0
        %1789 = vmatprep.subr.mxu0 0.0
        %1790 = vmatpush2.msra.mxu0 0.0
        %1791 = vmatprep.mubr.f32.mxu0 0.0
        %1792 = vmatmul.mubr.f32.gmra.mxu0 %v1708
        %v1793 = vpop.f32.mrf.mxu0
        %v1794 = vadd.f32 0.0, %v1793
        %v1795 = vpop.f32.mrf.mxu0
        %1796 = vmatprep.mubr.f32.mxu0 0.0
        %1797 = vmatmul.mubr.f32.gmra.mxu0 %v1709
        %v1798 = vpop.f32.mrf.mxu0
        %v1799 = vadd.f32 0.0, %v1798
        %v1800 = vpop.f32.mrf.mxu0
        %1801 = vdwg.mxu0
        %1802 = vmatprep.subr.mxu0 0.0
        %1803 = vmatpush1.msra.mxu0 %v1707
        %1804 = vmatprep.subr.mxu0 0.0
        %1805 = vmatpush1.msra.mxu0 %v1706
        %1806 = vmatprep.subr.mxu0 0.0
        %1807 = vmatpush1.msra.mxu0 %v1705
        %1808 = vmatprep.subr.mxu0 0.0
        %1809 = vmatpush1.msra.mxu0 %v1704
        %1810 = vmatprep.subr.mxu0 0.0
        %1811 = vmatpush1.msra.mxu0 %v1703
        %1812 = vmatprep.subr.mxu0 0.0
        %1813 = vmatpush1.msra.mxu0 %v1702
        %1814 = vmatprep.subr.mxu0 0.0
        %1815 = vmatpush1.msra.mxu0 %v1701
        %1816 = vmatprep.subr.mxu0 0.0
        %1817 = vmatpush1.msra.mxu0 %v1700
        %1818 = vmatprep.subr.mxu0 0.0
        %1819 = vmatpush1.msra.mxu0 %v1699
        %1820 = vmatprep.subr.mxu0 0.0
        %1821 = vmatpush1.msra.mxu0 %v1698
        %1822 = vmatprep.subr.mxu0 0.0
        %1823 = vmatpush1.msra.mxu0 %v1697
        %1824 = vmatprep.subr.mxu0 0.0
        %1825 = vmatpush1.msra.mxu0 %v1696
        %1826 = vmatprep.subr.mxu0 0.0
        %1827 = vmatpush1.msra.mxu0 %v1695
        %1828 = vmatprep.subr.mxu0 0.0
        %1829 = vmatpush1.msra.mxu0 %v1694
        %1830 = vmatprep.subr.mxu0 0.0
        %1831 = vmatpush1.msra.mxu0 %v1693
        %1832 = vmatprep.subr.mxu0 0.0
        %1833 = vmatpush1.msra.mxu0 %v1692
        %1834 = vmatprep.subr.mxu0 0.0
        %1835 = vmatpush2.msra.mxu0 0.0
        %1836 = vmatprep.subr.mxu0 0.0
        %1837 = vmatpush2.msra.mxu0 0.0
        %1838 = vmatprep.subr.mxu0 0.0
        %1839 = vmatpush2.msra.mxu0 0.0
        %1840 = vmatprep.subr.mxu0 0.0
        %1841 = vmatpush2.msra.mxu0 0.0
        %1842 = vmatprep.subr.mxu0 0.0
        %1843 = vmatpush2.msra.mxu0 0.0
        %1844 = vmatprep.subr.mxu0 0.0
        %1845 = vmatpush2.msra.mxu0 0.0
        %1846 = vmatprep.subr.mxu0 0.0
        %1847 = vmatpush2.msra.mxu0 0.0
        %1848 = vmatprep.subr.mxu0 0.0
        %1849 = vmatpush2.msra.mxu0 0.0
        %1850 = vmatprep.subr.mxu0 0.0
        %1851 = vmatpush2.msra.mxu0 0.0
        %1852 = vmatprep.subr.mxu0 0.0
        %1853 = vmatpush2.msra.mxu0 0.0
        %1854 = vmatprep.subr.mxu0 0.0
        %1855 = vmatpush2.msra.mxu0 0.0
        %1856 = vmatprep.subr.mxu0 0.0
        %1857 = vmatpush2.msra.mxu0 0.0
        %1858 = vmatprep.subr.mxu0 0.0
        %1859 = vmatpush2.msra.mxu0 0.0
        %1860 = vmatprep.subr.mxu0 0.0
        %1861 = vmatpush2.msra.mxu0 0.0
        %1862 = vmatprep.subr.mxu0 0.0
        %1863 = vmatpush2.msra.mxu0 0.0
        %1864 = vmatprep.subr.mxu0 0.0
        %1865 = vmatpush2.msra.mxu0 0.0
        %1866 = vmatprep.mubr.f32.mxu0 0.0
        %1867 = vmatmul.mubr.f32.gmra.mxu0 %v1687
        %v1868 = vpop.f32.mrf.mxu0
        %v1869 = vadd.f32 %v1794, %v1868
        %v1870 = vpop.f32.mrf.mxu0
        %1871 = vmatprep.mubr.f32.mxu0 0.0
        %1872 = vmatmul.mubr.f32.gmra.mxu0 %v1688
        %v1873 = vpop.f32.mrf.mxu0
        %v1874 = vadd.f32 %v1799, %v1873
        %v1875 = vpop.f32.mrf.mxu0
        %1876 = vdwg.mxu0
        %v1877 = vld [vmem:[#allocation2 + $0x2] sm:$0xff]
        %v1878 = vld [vmem:[#allocation2 + $0xa] sm:$0xff]
        %s1879 = scalar_lea.vmem [#allocation6], 1408
        %v1880 = vld [vmem:[%s1879] sm:$0xff]
        %v1881 = vld [vmem:[%s1879 + $0x8] sm:$0xff]
        %v1882 = vld [vmem:[%s1879 + $0x10] sm:$0xff]
        %v1883 = vld [vmem:[%s1879 + $0x18] sm:$0xff]
        %v1884 = vld [vmem:[%s1879 + $0x20] sm:$0xff]
        %v1885 = vld [vmem:[%s1879 + $0x28] sm:$0xff]
        %v1886 = vld [vmem:[%s1879 + $0x30] sm:$0xff]
        %v1887 = vld [vmem:[%s1879 + $0x38] sm:$0xff]
        %v1888 = vld [vmem:[%s1879 + $0x40] sm:$0xff]
        %v1889 = vld [vmem:[%s1879 + $0x48] sm:$0xff]
        %v1890 = vld [vmem:[%s1879 + $0x50] sm:$0xff]
        %v1891 = vld [vmem:[%s1879 + $0x58] sm:$0xff]
        %v1892 = vld [vmem:[%s1879 + $0x60] sm:$0xff]
        %v1893 = vld [vmem:[%s1879 + $0x68] sm:$0xff]
        %v1894 = vld [vmem:[%s1879 + $0x70] sm:$0xff]
        %v1895 = vld [vmem:[%s1879 + $0x78] sm:$0xff]
        %1896 = vmatprep.subr.mxu0 0.0
        %1897 = vmatpush1.msra.mxu0 %v1895
        %1898 = vmatprep.subr.mxu0 0.0
        %1899 = vmatpush1.msra.mxu0 %v1894
        %1900 = vmatprep.subr.mxu0 0.0
        %1901 = vmatpush1.msra.mxu0 %v1893
        %1902 = vmatprep.subr.mxu0 0.0
        %1903 = vmatpush1.msra.mxu0 %v1892
        %1904 = vmatprep.subr.mxu0 0.0
        %1905 = vmatpush1.msra.mxu0 %v1891
        %1906 = vmatprep.subr.mxu0 0.0
        %1907 = vmatpush1.msra.mxu0 %v1890
        %1908 = vmatprep.subr.mxu0 0.0
        %1909 = vmatpush1.msra.mxu0 %v1889
        %1910 = vmatprep.subr.mxu0 0.0
        %1911 = vmatpush1.msra.mxu0 %v1888
        %1912 = vmatprep.subr.mxu0 0.0
        %1913 = vmatpush1.msra.mxu0 %v1887
        %1914 = vmatprep.subr.mxu0 0.0
        %1915 = vmatpush1.msra.mxu0 %v1886
        %1916 = vmatprep.subr.mxu0 0.0
        %1917 = vmatpush1.msra.mxu0 %v1885
        %1918 = vmatprep.subr.mxu0 0.0
        %1919 = vmatpush1.msra.mxu0 %v1884
        %1920 = vmatprep.subr.mxu0 0.0
        %1921 = vmatpush1.msra.mxu0 %v1883
        %1922 = vmatprep.subr.mxu0 0.0
        %1923 = vmatpush1.msra.mxu0 %v1882
        %1924 = vmatprep.subr.mxu0 0.0
        %1925 = vmatpush1.msra.mxu0 %v1881
        %1926 = vmatprep.subr.mxu0 0.0
        %1927 = vmatpush1.msra.mxu0 %v1880
        %1928 = vmatprep.subr.mxu0 0.0
        %1929 = vmatpush2.msra.mxu0 0.0
        %1930 = vmatprep.subr.mxu0 0.0
        %1931 = vmatpush2.msra.mxu0 0.0
        %1932 = vmatprep.subr.mxu0 0.0
        %1933 = vmatpush2.msra.mxu0 0.0
        %1934 = vmatprep.subr.mxu0 0.0
        %1935 = vmatpush2.msra.mxu0 0.0
        %1936 = vmatprep.subr.mxu0 0.0
        %1937 = vmatpush2.msra.mxu0 0.0
        %1938 = vmatprep.subr.mxu0 0.0
        %1939 = vmatpush2.msra.mxu0 0.0
        %1940 = vmatprep.subr.mxu0 0.0
        %1941 = vmatpush2.msra.mxu0 0.0
        %1942 = vmatprep.subr.mxu0 0.0
        %1943 = vmatpush2.msra.mxu0 0.0
        %1944 = vmatprep.subr.mxu0 0.0
        %1945 = vmatpush2.msra.mxu0 0.0
        %1946 = vmatprep.subr.mxu0 0.0
        %1947 = vmatpush2.msra.mxu0 0.0
        %1948 = vmatprep.subr.mxu0 0.0
        %1949 = vmatpush2.msra.mxu0 0.0
        %1950 = vmatprep.subr.mxu0 0.0
        %1951 = vmatpush2.msra.mxu0 0.0
        %1952 = vmatprep.subr.mxu0 0.0
        %1953 = vmatpush2.msra.mxu0 0.0
        %1954 = vmatprep.subr.mxu0 0.0
        %1955 = vmatpush2.msra.mxu0 0.0
        %1956 = vmatprep.subr.mxu0 0.0
        %1957 = vmatpush2.msra.mxu0 0.0
        %1958 = vmatprep.subr.mxu0 0.0
        %1959 = vmatpush2.msra.mxu0 0.0
        %1960 = vmatprep.mubr.f32.mxu0 0.0
        %1961 = vmatmul.mubr.f32.gmra.mxu0 %v1877
        %v1962 = vpop.f32.mrf.mxu0
        %v1963 = vadd.f32 0.0, %v1962
        %v1964 = vpop.f32.mrf.mxu0
        %1965 = vmatprep.mubr.f32.mxu0 0.0
        %1966 = vmatmul.mubr.f32.gmra.mxu0 %v1878
        %v1967 = vpop.f32.mrf.mxu0
        %v1968 = vadd.f32 0.0, %v1967
        %v1969 = vpop.f32.mrf.mxu0
        %1970 = vdwg.mxu0
        %v1971 = vadd.f32 %v1869, %v1963
        %v1972 = vadd.f32 %v1874, %v1968
        %s1973 = scalar_lea.vmem [#allocation8], 3
        %v1974 = vld [vmem:[%s1973] sm:$0x1]
        %v1976 = vlaneseq
        %v1977 = vshrl.u32 %v1976, 7
        %v1978 = vsub.s32 0, %v1977
        %v1979 = vrot.slane %v1974, %v1978
        %v1981 = vadd.f32 %v1971, %v1979
        %v1982 = vadd.f32 %v1972, %v1979
        %1983 = vmatprep.subr.mxu0 0.0
        %1984 = vmatpush1.msra.mxu0 %v278
        %1985 = vmatprep.subr.mxu0 0.0
        %1986 = vmatpush1.msra.mxu0 %v277
        %1987 = vmatprep.subr.mxu0 0.0
        %1988 = vmatpush1.msra.mxu0 %v276
        %1989 = vmatprep.subr.mxu0 0.0
        %1990 = vmatpush1.msra.mxu0 %v275
        %1991 = vmatprep.subr.mxu0 0.0
        %1992 = vmatpush1.msra.mxu0 %v274
        %1993 = vmatprep.subr.mxu0 0.0
        %1994 = vmatpush1.msra.mxu0 %v273
        %1995 = vmatprep.subr.mxu0 0.0
        %1996 = vmatpush1.msra.mxu0 %v272
        %1997 = vmatprep.subr.mxu0 0.0
        %1998 = vmatpush1.msra.mxu0 %v271
        %1999 = vmatprep.subr.mxu0 0.0
        %2000 = vmatpush1.msra.mxu0 %v270
        %2001 = vmatprep.subr.mxu0 0.0
        %2002 = vmatpush1.msra.mxu0 %v269
        %2003 = vmatprep.subr.mxu0 0.0
        %2004 = vmatpush1.msra.mxu0 %v268
        %2005 = vmatprep.subr.mxu0 0.0
        %2006 = vmatpush1.msra.mxu0 %v267
        %2007 = vmatprep.subr.mxu0 0.0
        %2008 = vmatpush1.msra.mxu0 %v266
        %2009 = vmatprep.subr.mxu0 0.0
        %2010 = vmatpush1.msra.mxu0 %v265
        %2011 = vmatprep.subr.mxu0 0.0
        %2012 = vmatpush1.msra.mxu0 %v264
        %2013 = vmatprep.subr.mxu0 0.0
        %2014 = vmatpush1.msra.mxu0 %v263
        %2015 = vmatprep.subr.mxu0 0.0
        %2016 = vmatpush2.msra.mxu0 0.0
        %2017 = vmatprep.subr.mxu0 0.0
        %2018 = vmatpush2.msra.mxu0 0.0
        %2019 = vmatprep.subr.mxu0 0.0
        %2020 = vmatpush2.msra.mxu0 0.0
        %2021 = vmatprep.subr.mxu0 0.0
        %2022 = vmatpush2.msra.mxu0 0.0
        %2023 = vmatprep.subr.mxu0 0.0
        %2024 = vmatpush2.msra.mxu0 0.0
        %2025 = vmatprep.subr.mxu0 0.0
        %2026 = vmatpush2.msra.mxu0 0.0
        %2027 = vmatprep.subr.mxu0 0.0
        %2028 = vmatpush2.msra.mxu0 0.0
        %2029 = vmatprep.subr.mxu0 0.0
        %2030 = vmatpush2.msra.mxu0 0.0
        %2031 = vmatprep.subr.mxu0 0.0
        %2032 = vmatpush2.msra.mxu0 0.0
        %2033 = vmatprep.subr.mxu0 0.0
        %2034 = vmatpush2.msra.mxu0 0.0
        %2035 = vmatprep.subr.mxu0 0.0
        %2036 = vmatpush2.msra.mxu0 0.0
        %2037 = vmatprep.subr.mxu0 0.0
        %2038 = vmatpush2.msra.mxu0 0.0
        %2039 = vmatprep.subr.mxu0 0.0
        %2040 = vmatpush2.msra.mxu0 0.0
        %2041 = vmatprep.subr.mxu0 0.0
        %2042 = vmatpush2.msra.mxu0 0.0
        %2043 = vmatprep.subr.mxu0 0.0
        %2044 = vmatpush2.msra.mxu0 0.0
        %2045 = vmatprep.subr.mxu0 0.0
        %2046 = vmatpush2.msra.mxu0 0.0
        %2047 = vmatprep.mubr.f32.mxu0 0.0
        %2048 = vmatmul.mubr.f32.gmra.mxu0 %v1981
        %v2049 = vpop.f32.mrf.mxu0
        %v2050 = vadd.f32 0.0, %v2049
        %v2051 = vpop.f32.mrf.mxu0
        %2052 = vmatprep.mubr.f32.mxu0 0.0
        %2053 = vmatmul.mubr.f32.gmra.mxu0 %v1982
        %v2054 = vpop.f32.mrf.mxu0
        %v2055 = vadd.f32 0.0, %v2054
        %v2056 = vpop.f32.mrf.mxu0
        %2057 = vdwg.mxu0
        %v2058 = vadd.f32 %v2050, %v2055
        %v2059 = vrot.slane %v2058, 4
        %v2060 = vadd.f32 %v2058, %v2059
        %v2061 = vrot.slane %v2060, 2
        %v2062 = vadd.f32 %v2060, %v2061
        %v2063 = vrot.slane %v2062, 1
        %v2064 = vadd.f32 %v2062, %v2063
        %v2065 = vmul.f32 %v1981, %v1981
        %v2066 = vmul.f32 %v1982, %v1982
        %2067 = vmatprep.subr.mxu0 0.0
        %2068 = vmatpush1.msra.mxu0 %v278
        %2069 = vmatprep.subr.mxu0 0.0
        %2070 = vmatpush1.msra.mxu0 %v277
        %2071 = vmatprep.subr.mxu0 0.0
        %2072 = vmatpush1.msra.mxu0 %v276
        %2073 = vmatprep.subr.mxu0 0.0
        %2074 = vmatpush1.msra.mxu0 %v275
        %2075 = vmatprep.subr.mxu0 0.0
        %2076 = vmatpush1.msra.mxu0 %v274
        %2077 = vmatprep.subr.mxu0 0.0
        %2078 = vmatpush1.msra.mxu0 %v273
        %2079 = vmatprep.subr.mxu0 0.0
        %2080 = vmatpush1.msra.mxu0 %v272
        %2081 = vmatprep.subr.mxu0 0.0
        %2082 = vmatpush1.msra.mxu0 %v271
        %2083 = vmatprep.subr.mxu0 0.0
        %2084 = vmatpush1.msra.mxu0 %v270
        %2085 = vmatprep.subr.mxu0 0.0
        %2086 = vmatpush1.msra.mxu0 %v269
        %2087 = vmatprep.subr.mxu0 0.0
        %2088 = vmatpush1.msra.mxu0 %v268
        %2089 = vmatprep.subr.mxu0 0.0
        %2090 = vmatpush1.msra.mxu0 %v267
        %2091 = vmatprep.subr.mxu0 0.0
        %2092 = vmatpush1.msra.mxu0 %v266
        %2093 = vmatprep.subr.mxu0 0.0
        %2094 = vmatpush1.msra.mxu0 %v265
        %2095 = vmatprep.subr.mxu0 0.0
        %2096 = vmatpush1.msra.mxu0 %v264
        %2097 = vmatprep.subr.mxu0 0.0
        %2098 = vmatpush1.msra.mxu0 %v263
        %2099 = vmatprep.subr.mxu0 0.0
        %2100 = vmatpush2.msra.mxu0 0.0
        %2101 = vmatprep.subr.mxu0 0.0
        %2102 = vmatpush2.msra.mxu0 0.0
        %2103 = vmatprep.subr.mxu0 0.0
        %2104 = vmatpush2.msra.mxu0 0.0
        %2105 = vmatprep.subr.mxu0 0.0
        %2106 = vmatpush2.msra.mxu0 0.0
        %2107 = vmatprep.subr.mxu0 0.0
        %2108 = vmatpush2.msra.mxu0 0.0
        %2109 = vmatprep.subr.mxu0 0.0
        %2110 = vmatpush2.msra.mxu0 0.0
        %2111 = vmatprep.subr.mxu0 0.0
        %2112 = vmatpush2.msra.mxu0 0.0
        %2113 = vmatprep.subr.mxu0 0.0
        %2114 = vmatpush2.msra.mxu0 0.0
        %2115 = vmatprep.subr.mxu0 0.0
        %2116 = vmatpush2.msra.mxu0 0.0
        %2117 = vmatprep.subr.mxu0 0.0
        %2118 = vmatpush2.msra.mxu0 0.0
        %2119 = vmatprep.subr.mxu0 0.0
        %2120 = vmatpush2.msra.mxu0 0.0
        %2121 = vmatprep.subr.mxu0 0.0
        %2122 = vmatpush2.msra.mxu0 0.0
        %2123 = vmatprep.subr.mxu0 0.0
        %2124 = vmatpush2.msra.mxu0 0.0
        %2125 = vmatprep.subr.mxu0 0.0
        %2126 = vmatpush2.msra.mxu0 0.0
        %2127 = vmatprep.subr.mxu0 0.0
        %2128 = vmatpush2.msra.mxu0 0.0
        %2129 = vmatprep.subr.mxu0 0.0
        %2130 = vmatpush2.msra.mxu0 0.0
        %2131 = vmatprep.mubr.f32.mxu0 0.0
        %2132 = vmatmul.mubr.f32.gmra.mxu0 %v2065
        %v2133 = vpop.f32.mrf.mxu0
        %v2134 = vadd.f32 0.0, %v2133
        %v2135 = vpop.f32.mrf.mxu0
        %2136 = vmatprep.mubr.f32.mxu0 0.0
        %2137 = vmatmul.mubr.f32.gmra.mxu0 %v2066
        %v2138 = vpop.f32.mrf.mxu0
        %v2139 = vadd.f32 0.0, %v2138
        %v2140 = vpop.f32.mrf.mxu0
        %2141 = vdwg.mxu0
        %v2142 = vadd.f32 %v2134, %v2139
        %v2143 = vrot.slane %v2142, 4
        %v2144 = vadd.f32 %v2142, %v2143
        %v2145 = vrot.slane %v2144, 2
        %v2146 = vadd.f32 %v2144, %v2145
        %v2147 = vrot.slane %v2146, 1
        %v2148 = vadd.f32 %v2146, %v2147
        %v2149 = vmul.f32 %v2064, %v2064
        %v2150 = vsub.f32 %v2148, %v2149
        %v2151 = vadd.f32 %v2150, 1e-05
        %v2152 = vrsqrt.pop %v2151
        %v2153 = vsub.f32 %v1981, %v2064
        %v2154 = vsub.f32 %v1982, %v2064
        %v2155 = vmul.f32 %v2153, %v2152
        %v2156 = vmul.f32 %v2154, %v2152
        %v2157 = vadd.f32 %v2155, %v1217
        %v2158 = vadd.f32 %v2156, %v1218
        %2159 = vst [vmem:[%s259] sm:$0xff] %v2157
        %2160 = vst [vmem:[%s259 + $0x8] sm:$0xff] %v2158
        %s2161 = sand.u32 %s120, 1
        %s2162 = scalar_lea.sflag [#allocation5], %s2161
        %s2163 = sand.u32 %s120, 1
        %s2164 = smul.addr %s2163, 16
        %s2165 = scalar_lea.vmem [#allocation11], %s2164
        // Predicated region
        $region53: #{tpu_custom_call.1} parent=35 // pred_check
          %p2166 = pneg %p130
        $region54: #{tpu_custom_call.1} parent=35 // pred_check_branch
          %2168 = sbr.rel (%p2166) target = $region56
        $region55: #{tpu_custom_call.1} parent=35 // pred_region
          %s2170 = ssub.s32 256, 256
          %2171 = vsyncadd %s2162, %s2170
          %s2172 = smul.addr %s23, 2
          %s2173 = smul.addr %s2172, 128
          %s2174 = scalar_lea.hbm %s4, %s2173
          %s2175 = sshll.u32 %s2165, 4
          %s2176 = int_to_ptr.vmem [resolvable:$true] %s2175
          %2181 = dma.vmem_to_hbm [thread:$0]  %s2176, 256, %s2174, %s2162, 128, 128, 8
        $region56: #{tpu_custom_call.1} parent=35 // pred_fallthru
          _
      $region36: #{tpu_custom_call.1} parent=5 // pred_fallthru
        _
      %p2182 = scmp.le.s32.totalorder 2, %s18
      // Predicated region
      $region57: #{tpu_custom_call.1} parent=5 // pred_check
        %p2183 = pneg %p2182
      $region58: #{tpu_custom_call.1} parent=5 // pred_check_branch
        %2185 = sbr.rel (%p2183) target = $region60
      $region59: #{tpu_custom_call.1} parent=5 // pred_region
        %s2186 = ssub.s32 %s18, 2
        // Predicated region
        $region61: #{tpu_custom_call.1} parent=59 // pred_check
          %p2187 = pneg %p136
        $region62: #{tpu_custom_call.1} parent=59 // pred_check_branch
          %2189 = sbr.rel (%p2187) target = $region64
        $region63: #{tpu_custom_call.1} parent=59 // pred_region
          %s2190 = sand.u32 %s121, 1
          %s2191 = scalar_lea.sflag [#allocation5], %s2190
          %s2192 = sand.u32 %s121, 1
          %s2193 = smul.addr %s2192, 16
          %s2194 = scalar_lea.vmem [#allocation11], %s2193
          %2195 = dma.done %s2191, 256
        $region64: #{tpu_custom_call.1} parent=59 // pred_fallthru
          _
      $region60: #{tpu_custom_call.1} parent=5 // pred_fallthru
        _
    $region6: #{tpu_custom_call.1} parent=1 // loop_footer
      %s22 = sadd.s32 1, %s18
    $region7: #{tpu_custom_call.1} parent=1 // loop_footer_branch
      %17 = sbr.rel target = $region3
    $region8: #{tpu_custom_call.1} parent=1 // loop_exit
      _
    %2196 = vsyncpa [#allocation4], 1
    %s2197 = scalar_lea.sflag [#allocation4], 1
    %2198 = vsyncpa %s2197, 1
    %2199 = vsyncpa [#allocation7], 1
    %2200 = vsyncpa [#allocation10], 1
    %2201 = vsyncpa [#allocation5], 1
    %s2202 = scalar_lea.sflag [#allocation5], 1
    %2203 = vsyncpa %s2202, 1

</llo_original>
